<compile_context>
chip_gen: v6e
topology: v6e:2x2x1
jax: 0.10.0
libtpu: 0.0.40
codegen_flags: <defaults>
</compile_context>

<pallas_src>
import jax
import jax.numpy as jnp
import numpy as np
from jax import lax
from jax.experimental import pallas as pl
from jax.experimental.pallas import tpu as pltpu


def _round_up(x, m):
    return (x + m - 1) // m * m


_NEG = -1e30                # large finite negative (no NaN on fully-masked rows)
_NUM_SLAB_FIELDS = 6        # h_t | c_t | cctx | a_t | gen_p | hid


# -----------------------------------------------------------------------------
# Kernel 1: LSTM step + attention + pointer-gen prob + out_w1 (all tiny operands)
# -----------------------------------------------------------------------------
def decoder_core_kernel(
    embed_ref, h0_ref, c0_ref, enc_ref, encf_ref, maskb_ref, ctx_ref,
    w_in_c_ref, w_in_e_ref, b_in_ref,
    w_ih_ref, w_hh_ref, b_lstm_ref,
    att_ws_h_ref, att_ws_c_ref, att_v_ref,
    g_wh_ref, g_ws_h_ref, g_ws_c_ref, g_wx_ref,
    out_w1_h_ref, out_w1_c_ref, out_b1_ref, g_b_ref,
    slab_ref,
):
    f32 = jnp.float32
    B, L, H2 = enc_ref.shape
    H = h0_ref.shape[-1]
    WP = slab_ref.shape[-1] // _NUM_SLAB_FIELDS

    # bf16 weights, f32 accumulation on the MXU.
    # TODO(synk): at tiny B the MXU M dimension is nearly empty; callers should
    # batch beams/requests (B >= 128 v5e / >= 256 v6e,v7x) for MXU efficiency.
    def bdot(a, w_ref):
        return jnp.dot(a.astype(w_ref.dtype), w_ref[...], preferred_element_type=f32)

    # get_lstm_input: Linear(2H+E -> E); split matmul, no activation concat.
    x = bdot(ctx_ref[...], w_in_c_ref) + bdot(embed_ref[...], w_in_e_ref) + b_in_ref[...]

    # single-step LSTM cell (PyTorch gate order i, f, g, o), fused bias.
    gates = bdot(x, w_ih_ref) + bdot(h0_ref[...], w_hh_ref) + b_lstm_ref[...]
    i_g = jax.nn.sigmoid(gates[:, 0 * H:1 * H])
    f_g = jax.nn.sigmoid(gates[:, 1 * H:2 * H])
    g_g = jnp.tanh(gates[:, 2 * H:3 * H])
    o_g = jax.nn.sigmoid(gates[:, 3 * H:4 * H])
    c_t = f_g * c0_ref[...] + i_g * g_g
    h_t = o_g * jnp.tanh(c_t)

    # attention; enc_feat = enc @ W_h is step-invariant (precomputed outside).
    dec_feat = bdot(h_t, att_ws_h_ref) + bdot(c_t, att_ws_c_ref)            # (B, 2H)
    att_feat = jnp.tanh(encf_ref[...] + dec_feat[:, None, :])               # (B, L, 2H)
    # v-projection (N=1) as VPU multiply + lane reduce; mask is an additive bias.
    e_t = jnp.sum(att_feat * att_v_ref[...], axis=-1) + maskb_ref[...]      # (B, L)
    em = jnp.max(e_t, axis=-1, keepdims=True)
    ee = jnp.exp(e_t - em)
    a_t = ee * pl.reciprocal(jnp.sum(ee, axis=-1, keepdims=True), approx=True)

    # TODO(synk): at production L, compute cctx as a batched (1,L)x(L,2H) dot_general
    # on the MXU instead of an XLU sublane reduce (v6e/v7x only have 2 XLUs).
    cctx = jnp.sum(a_t[:, :, None] * enc_ref[...], axis=1)                  # (B, 2H)

    # pointer-generation probability: matvec-style VPU reductions, SMEM scalar bias.
    gen = (jnp.sum(cctx * g_wh_ref[...], axis=-1, keepdims=True)
           + jnp.sum(h_t * g_ws_h_ref[...], axis=-1, keepdims=True)
           + jnp.sum(c_t * g_ws_c_ref[...], axis=-1, keepdims=True)
           + jnp.sum(x * g_wx_ref[...], axis=-1, keepdims=True)
           + g_b_ref[0, 0])
    gen_p = jax.nn.sigmoid(gen)                                             # (B, 1)

    # first output layer: Linear(3H -> H) + ReLU (H -> V layer is streamed in kernel 2)
    hid = jnp.maximum(bdot(h_t, out_w1_h_ref) + bdot(cctx, out_w1_c_ref)
                      + out_b1_ref[...], 0.0)                               # (B, H)

    # lane-dense packed slab: full-width, 128-aligned, unmasked stores.
    def put(field, val):
        w = val.shape[-1]
        if w < WP:
            val = jnp.concatenate(
                [val, jnp.zeros((val.shape[0], WP - w), val.dtype)], axis=-1)
        slab_ref[:, field * WP:(field + 1) * WP] = val

    put(0, h_t)
    put(1, c_t)
    put(2, cctx)
    put(3, a_t)
    put(4, gen_p)
    put(5, hid)


# -----------------------------------------------------------------------------
# Kernel 2: streamed vocab-head matmul (bf16 tiles) + per-tile softmax stats
# -----------------------------------------------------------------------------
def vocab_logits_kernel(hid_ref, w2_ref, b2_ref, logits_ref, stats_ref):
    B = hid_ref.shape[0]
    logits = jnp.dot(hid_ref[...].astype(w2_ref.dtype), w2_ref[...],
                     preferred_element_type=jnp.float32) + b2_ref[...]       # (B, TV)
    logits_ref[...] = logits
    # per-tile stats; combined exactly (logsumexp-style) in the wrapper so the
    # vocab-tile grid axis can stay "parallel" (v7x: both TensorCores).
    t_max = jnp.max(logits, axis=-1, keepdims=True)                          # (B, 1)
    t_sum = jnp.sum(jnp.exp(logits - t_max), axis=-1, keepdims=True)         # (B, 1)
    stats_ref[:, 0:B, 0:1] = t_max[None, :, :]
    stats_ref[:, 0:B, 1:2] = t_sum[None, :, :]


# -----------------------------------------------------------------------------
# Kernel 3: exact softmax normalization * gen_p + per-tile pointer scatter_add
# -----------------------------------------------------------------------------
def pointer_mix_kernel(logits_ref, m_ref, s_ref, genp_ref, att_ref, oov_ref, final_ref):
    j = pl.program_id(0)
    B, TV = final_ref.shape
    L = att_ref.shape[0]

    gen_p = genp_ref[...]                                        # (B, 1)
    # exact (non-approx) reciprocal for the vocab distribution.
    base = jnp.exp(logits_ref[...] - m_ref[...]) * (gen_p / s_ref[...])      # (B, TV)
    one_m = 1.0 - gen_p                                          # (B, 1)
    # global column index of every lane in this tile (hoisted out of the loop).
    col = lax.broadcasted_iota(jnp.int32, (B, TV), 1) + j * TV

    # scatter_add restricted to the current tile: O(B*L*TV) VALU work that rides
    # under the logits/weight DMA; only a (B, TV) accumulator is live.
    def body(l, acc):
        idx_l = oov_ref[l]                                       # (B, 1) int32
        val_l = att_ref[l] * one_m                               # (B, 1)
        return acc + jnp.where(col == idx_l, val_l, 0.0)

    final_ref[...] = lax.fori_loop(0, L, body, base)


# -----------------------------------------------------------------------------
# Wrapper
# -----------------------------------------------------------------------------
def _nbytes(arrs):
    return int(sum(int(np.prod(a.shape)) * np.dtype(a.dtype).itemsize for a in arrs))


def _vmem_limit(nbytes):
    # cap at 32 MiB so the budget also holds on v7x (64 MiB / TensorCore).
    return int(min(max(2 * nbytes + (2 << 20), 8 << 20), 32 << 20))


def decoder_forward(params, decoder_input_one_step, decoder_status, encoder_output,
                    encoder_mask, context_vec, oovs_zero, encoder_with_oov,
                    coverage=None, step=0, tile_v=128):
    # use_coverage=False path; coverage / step unused (default-constructed module).
    # nn.Dropout is never applied in the reference forward (single-layer LSTM).
    # TODO(synk): in an autoregressive decode loop, prefetch next step's out_w2
    # tiles with a cross-call DMA future instead of re-streaming per token (v5e HBM).
    f32 = jnp.float32
    bf16 = jnp.bfloat16
    h0, c0 = decoder_status
    B, L, H2 = encoder_output.shape
    H = H2 // 2
    V, E = params["emb"].shape
    NOOV = oovs_zero.shape[-1]
    VEXT = V + NOOV
    TV = _round_up(tile_v, 128)
    VPAD = _round_up(VEXT, TV)
    NVT = VPAD // TV
    WP = _round_up(max(2 * H, L), 128)
    SLAB = _NUM_SLAB_FIELDS * WP
    SB = _round_up(max(B, 8), 8)

    # ---- hoisted / step-invariant prep (plain JAX: gathers + layout plumbing) ----
    tok = decoder_input_one_step.astype(jnp.int32).reshape(B)
    embed = jnp.take(params["emb"].astype(f32), tok, axis=0)          # gather stays in HBM
    enc = encoder_output.astype(f32)
    enc_feat = jnp.einsum('blk,kj->blj', enc, params["att_wh"]).astype(f32)
    mask_bias = jnp.where(encoder_mask == 0, jnp.float32(_NEG), 0.0).astype(f32)
    oov = jnp.clip(encoder_with_oov.astype(jnp.int32), 0, VEXT - 1)   # jnp-style clamp
    oov_t = oov.T[:, :, None]                                         # (L, B, 1)

    # split weights (no activation concat in-kernel) + bf16 cast for the MXU.
    w_in_c = params["w_in"][:2 * H].astype(bf16)
    w_in_e = params["w_in"][2 * H:].astype(bf16)
    b_lstm = (params["b_ih"] + params["b_hh"]).astype(f32)
    w_ih = params["w_ih"].astype(bf16)
    w_hh = params["w_hh"].astype(bf16)
    att_ws_h = params["att_ws"][:H].astype(bf16)
    att_ws_c = params["att_ws"][H:].astype(bf16)
    att_v_row = params["att_v"].reshape(1, 2 * H).astype(f32)
    g_wh = params["g_wh"].reshape(1, 2 * H).astype(f32)
    g_ws_h = params["g_ws"][:H].reshape(1, H).astype(f32)
    g_ws_c = params["g_ws"][H:].reshape(1, H).astype(f32)
    g_wx = params["g_wx"].reshape(1, E).astype(f32)
    g_b = (params["g_bh"] + params["g_bs"] + params["g_bx"]).reshape(1, 1).astype(f32)
    out_w1_h = params["out_w1"][:H].astype(bf16)
    out_w1_c = params["out_w1"][H:].astype(bf16)
    # vocab head padded to a 128 multiple; padded logit columns get -1e30 so they
    # contribute exactly 0 to the softmax and to the final distribution.
    w2_pad = jnp.zeros((H, VPAD), bf16).at[:, :V].set(params["out_w2"].astype(bf16))
    b2_pad = jnp.full((1, VPAD), _NEG, f32).at[:, :V].set(params["out_b2"].astype(f32))

    vmem_spec = pl.BlockSpec(memory_space=pltpu.MemorySpace.VMEM)
    smem_spec = pl.BlockSpec(memory_space=pltpu.MemorySpace.SMEM)

    # ------------------ kernel 1: LSTM + attention + gen_p + out_w1 ------------------
    core_inputs = (embed, h0.reshape(B, H).astype(f32), c0.reshape(B, H).astype(f32),
                   enc, enc_feat, mask_bias, context_vec.astype(f32),
                   w_in_c, w_in_e, params["b_in"].astype(f32),
                   w_ih, w_hh, b_lstm,
                   att_ws_h, att_ws_c, att_v_row,
                   g_wh, g_ws_h, g_ws_c, g_wx,
                   out_w1_h, out_w1_c, params["out_b1"].astype(f32),
                   g_b)
    core_in_specs = [vmem_spec] * (len(core_inputs) - 1) + [smem_spec]  # g_b -> SMEM
    slab_shape = jax.ShapeDtypeStruct((B, SLAB), f32)
    core_bytes = _nbytes(core_inputs) + _nbytes([slab_shape])
    slab = pl.pallas_call(
        decoder_core_kernel,
        out_shape=slab_shape,
        in_specs=core_in_specs,
        out_specs=vmem_spec,
        compiler_params=pltpu.CompilerParams(vmem_limit_bytes=_vmem_limit(core_bytes)),
        cost_estimate=pl.CostEstimate(
            flops=int(2 * B * (2 * H * E + E * E + (E + H) * 4 * H
                               + 2 * 2 * H * H + 2 * L * 2 * H + 3 * H * H)),
            transcendentals=int(B * (5 * H + L * 2 * H + L + 1)),
            bytes_accessed=core_bytes),
    )(*core_inputs)

    h_t = slab[:, 0 * WP:0 * WP + H]
    c_t = slab[:, 1 * WP:1 * WP + H]
    cctx = slab[:, 2 * WP:2 * WP + 2 * H]
    a_t = slab[:, 3 * WP:3 * WP + L]
    gen_p = slab[:, 4 * WP:4 * WP + 1]
    hid = slab[:, 5 * WP:5 * WP + H]

    # --------------- kernel 2: streamed H x V matmul + per-tile softmax stats ---------------
    logits_shape = jax.ShapeDtypeStruct((B, VPAD), f32)
    stats_shape = jax.ShapeDtypeStruct((NVT, SB, 128), f32)
    vocab_inputs = (hid, w2_pad, b2_pad)
    vocab_bytes = _nbytes(vocab_inputs) + _nbytes([logits_shape, stats_shape])
    logits_pad, stats = pl.pallas_call(
        vocab_logits_kernel,
        out_shape=(logits_shape, stats_shape),
        grid=(NVT,),
        in_specs=[pl.BlockSpec((B, H), lambda j: (0, 0)),
                  pl.BlockSpec((H, TV), lambda j: (0, j)),
                  pl.BlockSpec((1, TV), lambda j: (0, j))],
        out_specs=(pl.BlockSpec((B, TV), lambda j: (0, j)),
                   pl.BlockSpec((1, SB, 128), lambda j: (j, 0, 0))),
        compiler_params=pltpu.CompilerParams(
            dimension_semantics=("parallel",),       # v7x: split vocab tiles over both TCs
            vmem_limit_bytes=_vmem_limit(vocab_bytes)),
        cost_estimate=pl.CostEstimate(
            flops=int(2 * B * H * VPAD),
            transcendentals=int(B * VPAD),
            bytes_accessed=vocab_bytes),
    )(*vocab_inputs)

    # exact softmax-stat combine (tiny: NVT x B, plain JAX)
    t_max = stats[:, :B, 0]                                           # (NVT, B)
    t_sum = stats[:, :B, 1]                                           # (NVT, B)
    m = jnp.max(t_max, axis=0)                                        # (B,)
    s = jnp.sum(t_sum * jnp.exp(t_max - m[None, :]), axis=0)          # (B,)
    m2 = m.reshape(B, 1)
    s2 = s.reshape(B, 1)
    att_t = a_t.T[:, :, None]                                         # (L, B, 1)

    # ------------- kernel 3: normalize + pointer mixture + per-tile scatter -------------
    final_shape = jax.ShapeDtypeStruct((B, VPAD), f32)
    mix_inputs = (logits_pad, m2, s2, gen_p, att_t, oov_t)
    mix_bytes = _nbytes(mix_inputs) + _nbytes([final_shape])
    final_pad = pl.pallas_call(
        pointer_mix_kernel,
        out_shape=final_shape,
        grid=(NVT,),
        in_specs=[pl.BlockSpec((B, TV), lambda j: (0, j)),
                  pl.BlockSpec((B, 1), lambda j: (0, 0)),
                  pl.BlockSpec((B, 1), lambda j: (0, 0)),
                  pl.BlockSpec((B, 1), lambda j: (0, 0)),
                  pl.BlockSpec((L, B, 1), lambda j: (0, 0, 0)),
                  pl.BlockSpec((L, B, 1), lambda j: (0, 0, 0))],
        out_specs=pl.BlockSpec((B, TV), lambda j: (0, j)),
        compiler_params=pltpu.CompilerParams(
            dimension_semantics=("parallel",),
            vmem_limit_bytes=_vmem_limit(mix_bytes)),
        cost_estimate=pl.CostEstimate(
            flops=int(B * VPAD * (2 * L + 4)),
            transcendentals=int(B * VPAD),
            bytes_accessed=mix_bytes),
    )(*mix_inputs)

    final_dist = final_pad[:, :VEXT]
    next_decoder_status = (h_t.reshape(1, B, H), c_t.reshape(1, B, H))
    next_coverage = None
    return final_dist, next_decoder_status, cctx, a_t, gen_p, next_coverage


# ---------------- pure-JAX reference (for verification only) ----------------
def decoder_ref(params, tok, decoder_status, enc, mask, ctx, oovs_zero, oov_idx):
    h0, c0 = decoder_status
    B, L, H2 = enc.shape
    H = H2 // 2
    embed = params["emb"][tok]
    x = jnp.concatenate([ctx, embed], -1) @ params["w_in"] + params["b_in"]
    h0 = h0.reshape(B, H); c0 = c0.reshape(B, H)
    gates = x @ params["w_ih"] + params["b_ih"] + h0 @ params["w_hh"] + params["b_hh"]
    i_g = jax.nn.sigmoid(gates[:, :H]); f_g = jax.nn.sigmoid(gates[:, H:2 * H])
    g_g = jnp.tanh(gates[:, 2 * H:3 * H]); o_g = jax.nn.sigmoid(gates[:, 3 * H:])
    c_t = f_g * c0 + i_g * g_g
    h_t = o_g * jnp.tanh(c_t)
    status = jnp.concatenate([h_t, c_t], -1)
    enc_feat = enc @ params["att_wh"]
    dec_feat = status @ params["att_ws"]
    e_t = (jnp.tanh(enc_feat + dec_feat[:, None, :]) @ params["att_v"])[..., 0]
    e_t = jnp.where(mask == 0, -jnp.inf, e_t)
    a_t = jax.nn.softmax(e_t, axis=-1)
    cctx = jnp.einsum('bl,blc->bc', a_t, enc)
    gen_p = jax.nn.sigmoid(cctx @ params["g_wh"] + params["g_bh"]
                           + status @ params["g_ws"] + params["g_bs"]
                           + x @ params["g_wx"] + params["g_bx"])
    out_feature = jnp.concatenate([h_t, cctx], -1)
    hid = jax.nn.relu(out_feature @ params["out_w1"] + params["out_b1"])
    logits = hid @ params["out_w2"] + params["out_b2"]
    vocab_dist = jax.nn.softmax(logits, axis=-1)
    vocab_dist_p = vocab_dist * gen_p
    context_dist_p = a_t * (1.0 - gen_p)
    vocab_ext = jnp.concatenate([vocab_dist_p, oovs_zero], -1)
    final = vocab_ext.at[jnp.arange(B)[:, None], oov_idx].add(context_dist_p)
    return final, h_t, c_t, cctx, a_t, gen_p


def init_params(key, V, E, H):
    ks = jax.random.split(key, 24)
    def rnd(k, shape, scale=0.1):
        return (scale * jax.random.normal(k, shape)).astype(jnp.float32)
    emb = rnd(ks[0], (V, E)).at[0].set(0.0)  # padding_idx = 0
    return dict(
        emb=emb,
        w_in=rnd(ks[1], (2 * H + E, E)), b_in=rnd(ks[2], (1, E)),
        w_ih=rnd(ks[3], (E, 4 * H)), w_hh=rnd(ks[4], (H, 4 * H)),
        b_ih=rnd(ks[5], (1, 4 * H)), b_hh=rnd(ks[6], (1, 4 * H)),
        att_wh=rnd(ks[7], (2 * H, 2 * H)), att_ws=rnd(ks[8], (2 * H, 2 * H)),
        att_v=rnd(ks[9], (2 * H, 1)),
        g_wh=rnd(ks[10], (2 * H, 1)), g_bh=rnd(ks[11], (1, 1)),
        g_ws=rnd(ks[12], (2 * H, 1)), g_bs=rnd(ks[13], (1, 1)),
        g_wx=rnd(ks[14], (E, 1)), g_bx=rnd(ks[15], (1, 1)),
        out_w1=rnd(ks[16], (3 * H, H)), out_b1=rnd(ks[17], (1, H)),
        out_w2=rnd(ks[18], (H, V)), out_b2=rnd(ks[19], (1, V)),
    )


if __name__ == "__main__":
    # small shapes; V chosen so the vocab head spans several 128-wide tiles.
    B, L, E, H, V, NOOV = 2, 8, 32, 32, 320, 12

    key = jax.random.PRNGKey(0)
    kp, k1, k2, k3, k4, k5, k6 = jax.random.split(key, 7)
    params = init_params(kp, V, E, H)

    tokens = jax.random.randint(k1, (B,), 1, V, dtype=jnp.int32)
    h0 = 0.1 * jax.random.normal(k2, (1, B, H), dtype=jnp.float32)
    c0 = 0.1 * jax.random.normal(k3, (1, B, H), dtype=jnp.float32)
    encoder_output = jax.random.normal(k4, (B, L, 2 * H), dtype=jnp.float32)
    encoder_mask = jnp.ones((B, L), dtype=jnp.float32).at[1, L - 2:].set(0.0)
    context_vec = 0.1 * jax.random.normal(k5, (B, 2 * H), dtype=jnp.float32)
    oovs_zero = jnp.zeros((B, NOOV), dtype=jnp.float32)
    encoder_with_oov = jax.random.randint(k6, (B, L), 0, V + NOOV, dtype=jnp.int32)

    outs = decoder_forward(params, tokens, (h0, c0), encoder_output, encoder_mask,
                           context_vec, oovs_zero, encoder_with_oov,
                           coverage=None, step=0)
    final_dist, (h_t, c_t), cctx, a_t, gen_p, next_cov = jax.tree_util.tree_map(
        jax.block_until_ready, outs)

    # verify against a plain-JAX reference
    rf, rh, rc, rctx, ra, rg = decoder_ref(params, tokens, (h0, c0), encoder_output,
                                           encoder_mask, context_vec, oovs_zero,
                                           encoder_with_oov)
    np.testing.assert_allclose(np.asarray(final_dist), np.asarray(rf), rtol=5e-2, atol=3e-3)
    np.testing.assert_allclose(np.asarray(h_t[0]), np.asarray(rh), rtol=5e-2, atol=3e-3)
    np.testing.assert_allclose(np.asarray(c_t[0]), np.asarray(rc), rtol=5e-2, atol=3e-3)
    np.testing.assert_allclose(np.asarray(cctx), np.asarray(rctx), rtol=5e-2, atol=3e-3)
    np.testing.assert_allclose(np.asarray(a_t), np.asarray(ra), rtol=5e-2, atol=3e-3)
    np.testing.assert_allclose(np.asarray(gen_p), np.asarray(rg), rtol=5e-2, atol=3e-3)

    print("KERNEL_OK")
</pallas_src>

<mosaic_0001>
module attributes {stable_mosaic.version = 11 : i64} {
  func.func @decoder_core_kernel(%arg0: memref<2x32xf32, #tpu.memory_space<vmem>>, %arg1: memref<2x32xf32, #tpu.memory_space<vmem>>, %arg2: memref<2x32xf32, #tpu.memory_space<vmem>>, %arg3: memref<2x8x64xf32, #tpu.memory_space<vmem>>, %arg4: memref<2x8x64xf32, #tpu.memory_space<vmem>>, %arg5: memref<2x8xf32, #tpu.memory_space<vmem>>, %arg6: memref<2x64xf32, #tpu.memory_space<vmem>>, %arg7: memref<64x32xbf16, #tpu.memory_space<vmem>>, %arg8: memref<32x32xbf16, #tpu.memory_space<vmem>>, %arg9: memref<1x32xf32, #tpu.memory_space<vmem>>, %arg10: memref<32x128xbf16, #tpu.memory_space<vmem>>, %arg11: memref<32x128xbf16, #tpu.memory_space<vmem>>, %arg12: memref<1x128xf32, #tpu.memory_space<vmem>>, %arg13: memref<32x64xbf16, #tpu.memory_space<vmem>>, %arg14: memref<32x64xbf16, #tpu.memory_space<vmem>>, %arg15: memref<1x64xf32, #tpu.memory_space<vmem>>, %arg16: memref<1x64xf32, #tpu.memory_space<vmem>>, %arg17: memref<1x32xf32, #tpu.memory_space<vmem>>, %arg18: memref<1x32xf32, #tpu.memory_space<vmem>>, %arg19: memref<1x32xf32, #tpu.memory_space<vmem>>, %arg20: memref<32x32xbf16, #tpu.memory_space<vmem>>, %arg21: memref<64x32xbf16, #tpu.memory_space<vmem>>, %arg22: memref<1x32xf32, #tpu.memory_space<vmem>>, %arg23: memref<1x1xf32, #tpu.memory_space<smem>>, %arg24: memref<2x768xf32, #tpu.memory_space<vmem>>) attributes {dimension_semantics = [], scalar_prefetch = 0 : i64, scratch_operands = 0 : i64, tpu.core_type = #tpu.core_type<tc>} {
    %c0 = arith.constant 0 : index
    %c0_0 = arith.constant 0 : index
    %0 = vector.load %arg6[%c0, %c0_0] : memref<2x64xf32, #tpu.memory_space<vmem>>, vector<2x64xf32>
    %1 = arith.truncf %0 : vector<2x64xf32> to vector<2x64xbf16>
    %c0_1 = arith.constant 0 : index
    %c0_2 = arith.constant 0 : index
    %2 = vector.load %arg7[%c0_1, %c0_2] : memref<64x32xbf16, #tpu.memory_space<vmem>>, vector<64x32xbf16>
    %cst = arith.constant dense<0.000000e+00> : vector<2x32xf32>
    %3 = tpu.matmul %1, %2, %cst {dimension_numbers = #tpu.dot_dimension_numbers<[1], [0], [0], [1], [0, 0, 1, 1], [], []>} : vector<2x64xbf16>, vector<64x32xbf16>, vector<2x32xf32> -> vector<2x32xf32>
    %c0_3 = arith.constant 0 : index
    %c0_4 = arith.constant 0 : index
    %4 = vector.load %arg0[%c0_3, %c0_4] : memref<2x32xf32, #tpu.memory_space<vmem>>, vector<2x32xf32>
    %5 = arith.truncf %4 : vector<2x32xf32> to vector<2x32xbf16>
    %c0_5 = arith.constant 0 : index
    %c0_6 = arith.constant 0 : index
    %6 = vector.load %arg8[%c0_5, %c0_6] : memref<32x32xbf16, #tpu.memory_space<vmem>>, vector<32x32xbf16>
    %cst_7 = arith.constant dense<0.000000e+00> : vector<2x32xf32>
    %7 = tpu.matmul %5, %6, %cst_7 {dimension_numbers = #tpu.dot_dimension_numbers<[1], [0], [0], [1], [0, 0, 1, 1], [], []>} : vector<2x32xbf16>, vector<32x32xbf16>, vector<2x32xf32> -> vector<2x32xf32>
    %8 = arith.addf %3, %7 : vector<2x32xf32>
    %c0_8 = arith.constant 0 : index
    %c0_9 = arith.constant 0 : index
    %9 = vector.load %arg9[%c0_8, %c0_9] : memref<1x32xf32, #tpu.memory_space<vmem>>, vector<1x32xf32>
    %10 = vector.broadcast %9 : vector<1x32xf32> to vector<2x32xf32>
    %11 = arith.addf %8, %10 : vector<2x32xf32>
    %12 = arith.truncf %11 : vector<2x32xf32> to vector<2x32xbf16>
    %c0_10 = arith.constant 0 : index
    %c0_11 = arith.constant 0 : index
    %13 = vector.load %arg10[%c0_10, %c0_11] : memref<32x128xbf16, #tpu.memory_space<vmem>>, vector<32x128xbf16>
    %cst_12 = arith.constant dense<0.000000e+00> : vector<2x128xf32>
    %14 = tpu.matmul %12, %13, %cst_12 {dimension_numbers = #tpu.dot_dimension_numbers<[1], [0], [0], [1], [0, 0, 1, 1], [], []>} : vector<2x32xbf16>, vector<32x128xbf16>, vector<2x128xf32> -> vector<2x128xf32>
    %c0_13 = arith.constant 0 : index
    %c0_14 = arith.constant 0 : index
    %15 = vector.load %arg1[%c0_13, %c0_14] : memref<2x32xf32, #tpu.memory_space<vmem>>, vector<2x32xf32>
    %16 = arith.truncf %15 : vector<2x32xf32> to vector<2x32xbf16>
    %c0_15 = arith.constant 0 : index
    %c0_16 = arith.constant 0 : index
    %17 = vector.load %arg11[%c0_15, %c0_16] : memref<32x128xbf16, #tpu.memory_space<vmem>>, vector<32x128xbf16>
    %cst_17 = arith.constant dense<0.000000e+00> : vector<2x128xf32>
    %18 = tpu.matmul %16, %17, %cst_17 {dimension_numbers = #tpu.dot_dimension_numbers<[1], [0], [0], [1], [0, 0, 1, 1], [], []>} : vector<2x32xbf16>, vector<32x128xbf16>, vector<2x128xf32> -> vector<2x128xf32>
    %19 = arith.addf %14, %18 : vector<2x128xf32>
    %c0_18 = arith.constant 0 : index
    %c0_19 = arith.constant 0 : index
    %20 = vector.load %arg12[%c0_18, %c0_19] : memref<1x128xf32, #tpu.memory_space<vmem>>, vector<1x128xf32>
    %21 = vector.broadcast %20 : vector<1x128xf32> to vector<2x128xf32>
    %22 = arith.addf %19, %21 : vector<2x128xf32>
    %23 = vector.extract_strided_slice %22 {offsets = [0, 0], sizes = [2, 32], strides = [1, 1]} : vector<2x128xf32> to vector<2x32xf32>
    %24 = arith.negf %23 : vector<2x32xf32>
    %25 = math.exp %24 : vector<2x32xf32>
    %cst_20 = arith.constant 1.000000e+00 : f32
    %26 = vector.broadcast %cst_20 : f32 to vector<2x32xf32>
    %27 = arith.addf %26, %25 : vector<2x32xf32>
    %28 = arith.divf %26, %27 : vector<2x32xf32>
    %29 = vector.extract_strided_slice %22 {offsets = [0, 32], sizes = [2, 32], strides = [1, 1]} : vector<2x128xf32> to vector<2x32xf32>
    %30 = arith.negf %29 : vector<2x32xf32>
    %31 = math.exp %30 : vector<2x32xf32>
    %cst_21 = arith.constant 1.000000e+00 : f32
    %32 = vector.broadcast %cst_21 : f32 to vector<2x32xf32>
    %33 = arith.addf %32, %31 : vector<2x32xf32>
    %34 = arith.divf %32, %33 : vector<2x32xf32>
    %35 = vector.extract_strided_slice %22 {offsets = [0, 64], sizes = [2, 32], strides = [1, 1]} : vector<2x128xf32> to vector<2x32xf32>
    %36 = math.tanh %35 : vector<2x32xf32>
    %37 = vector.extract_strided_slice %22 {offsets = [0, 96], sizes = [2, 32], strides = [1, 1]} : vector<2x128xf32> to vector<2x32xf32>
    %38 = arith.negf %37 : vector<2x32xf32>
    %39 = math.exp %38 : vector<2x32xf32>
    %cst_22 = arith.constant 1.000000e+00 : f32
    %40 = vector.broadcast %cst_22 : f32 to vector<2x32xf32>
    %41 = arith.addf %40, %39 : vector<2x32xf32>
    %42 = arith.divf %40, %41 : vector<2x32xf32>
    %c0_23 = arith.constant 0 : index
    %c0_24 = arith.constant 0 : index
    %43 = vector.load %arg2[%c0_23, %c0_24] : memref<2x32xf32, #tpu.memory_space<vmem>>, vector<2x32xf32>
    %44 = arith.mulf %34, %43 : vector<2x32xf32>
    %45 = arith.mulf %28, %36 : vector<2x32xf32>
    %46 = arith.addf %44, %45 : vector<2x32xf32>
    %47 = math.tanh %46 : vector<2x32xf32>
    %48 = arith.mulf %42, %47 : vector<2x32xf32>
    %49 = arith.truncf %48 : vector<2x32xf32> to vector<2x32xbf16>
    %c0_25 = arith.constant 0 : index
    %c0_26 = arith.constant 0 : index
    %50 = vector.load %arg13[%c0_25, %c0_26] : memref<32x64xbf16, #tpu.memory_space<vmem>>, vector<32x64xbf16>
    %cst_27 = arith.constant dense<0.000000e+00> : vector<2x64xf32>
    %51 = tpu.matmul %49, %50, %cst_27 {dimension_numbers = #tpu.dot_dimension_numbers<[1], [0], [0], [1], [0, 0, 1, 1], [], []>} : vector<2x32xbf16>, vector<32x64xbf16>, vector<2x64xf32> -> vector<2x64xf32>
    %52 = arith.truncf %46 : vector<2x32xf32> to vector<2x32xbf16>
    %c0_28 = arith.constant 0 : index
    %c0_29 = arith.constant 0 : index
    %53 = vector.load %arg14[%c0_28, %c0_29] : memref<32x64xbf16, #tpu.memory_space<vmem>>, vector<32x64xbf16>
    %cst_30 = arith.constant dense<0.000000e+00> : vector<2x64xf32>
    %54 = tpu.matmul %52, %53, %cst_30 {dimension_numbers = #tpu.dot_dimension_numbers<[1], [0], [0], [1], [0, 0, 1, 1], [], []>} : vector<2x32xbf16>, vector<32x64xbf16>, vector<2x64xf32> -> vector<2x64xf32>
    %55 = arith.addf %51, %54 : vector<2x64xf32>
    %c0_31 = arith.constant 0 : index
    %c0_32 = arith.constant 0 : index
    %c0_33 = arith.constant 0 : index
    %56 = vector.load %arg4[%c0_31, %c0_32, %c0_33] : memref<2x8x64xf32, #tpu.memory_space<vmem>>, vector<2x8x64xf32>
    %57 = vector.shape_cast %55 : vector<2x64xf32> to vector<2x1x64xf32>
    %58 = vector.broadcast %57 : vector<2x1x64xf32> to vector<2x8x64xf32>
    %59 = arith.addf %56, %58 : vector<2x8x64xf32>
    %60 = math.tanh %59 : vector<2x8x64xf32>
    %c0_34 = arith.constant 0 : index
    %c0_35 = arith.constant 0 : index
    %61 = vector.load %arg15[%c0_34, %c0_35] : memref<1x64xf32, #tpu.memory_space<vmem>>, vector<1x64xf32>
    %62 = vector.shape_cast %61 : vector<1x64xf32> to vector<1x1x64xf32>
    %63 = vector.broadcast %62 : vector<1x1x64xf32> to vector<2x8x64xf32>
    %64 = arith.mulf %60, %63 : vector<2x8x64xf32>
    %cst_36 = arith.constant dense<0.000000e+00> : vector<2x8xf32>
    %65 = vector.multi_reduction <add>, %64, %cst_36 [2] : vector<2x8x64xf32> to vector<2x8xf32>
    %c0_37 = arith.constant 0 : index
    %c0_38 = arith.constant 0 : index
    %66 = vector.load %arg5[%c0_37, %c0_38] : memref<2x8xf32, #tpu.memory_space<vmem>>, vector<2x8xf32>
    %67 = arith.addf %65, %66 : vector<2x8xf32>
    %cst_39 = arith.constant dense<0xFF800000> : vector<2xf32>
    %68 = vector.multi_reduction <maximumf>, %67, %cst_39 [1] : vector<2x8xf32> to vector<2xf32>
    %69 = vector.shape_cast %68 : vector<2xf32> to vector<2x1xf32>
    %70 = vector.broadcast %69 : vector<2x1xf32> to vector<2x8xf32>
    %71 = arith.subf %67, %70 : vector<2x8xf32>
    %72 = math.exp %71 : vector<2x8xf32>
    %cst_40 = arith.constant dense<0.000000e+00> : vector<2xf32>
    %73 = vector.multi_reduction <add>, %72, %cst_40 [1] : vector<2x8xf32> to vector<2xf32>
    %74 = vector.shape_cast %73 : vector<2xf32> to vector<2x1xf32>
    %75 = tpu.reciprocal %74 {approx = true} : vector<2x1xf32> -> vector<2x1xf32>
    %76 = vector.broadcast %75 : vector<2x1xf32> to vector<2x8xf32>
    %77 = arith.mulf %72, %76 : vector<2x8xf32>
    %78 = vector.shape_cast %77 : vector<2x8xf32> to vector<2x8x1xf32>
    %c0_41 = arith.constant 0 : index
    %c0_42 = arith.constant 0 : index
    %c0_43 = arith.constant 0 : index
    %79 = vector.load %arg3[%c0_41, %c0_42, %c0_43] : memref<2x8x64xf32, #tpu.memory_space<vmem>>, vector<2x8x64xf32>
    %80 = vector.broadcast %78 : vector<2x8x1xf32> to vector<2x8x64xf32>
    %81 = arith.mulf %80, %79 : vector<2x8x64xf32>
    %cst_44 = arith.constant dense<0.000000e+00> : vector<2x64xf32>
    %82 = vector.multi_reduction <add>, %81, %cst_44 [1] : vector<2x8x64xf32> to vector<2x64xf32>
    %c0_45 = arith.constant 0 : index
    %c0_46 = arith.constant 0 : index
    %83 = vector.load %arg16[%c0_45, %c0_46] : memref<1x64xf32, #tpu.memory_space<vmem>>, vector<1x64xf32>
    %84 = vector.broadcast %83 : vector<1x64xf32> to vector<2x64xf32>
    %85 = arith.mulf %82, %84 : vector<2x64xf32>
    %cst_47 = arith.constant dense<0.000000e+00> : vector<2xf32>
    %86 = vector.multi_reduction <add>, %85, %cst_47 [1] : vector<2x64xf32> to vector<2xf32>
    %87 = vector.shape_cast %86 : vector<2xf32> to vector<2x1xf32>
    %c0_48 = arith.constant 0 : index
    %c0_49 = arith.constant 0 : index
    %88 = vector.load %arg17[%c0_48, %c0_49] : memref<1x32xf32, #tpu.memory_space<vmem>>, vector<1x32xf32>
    %89 = vector.broadcast %88 : vector<1x32xf32> to vector<2x32xf32>
    %90 = arith.mulf %48, %89 : vector<2x32xf32>
    %cst_50 = arith.constant dense<0.000000e+00> : vector<2xf32>
    %91 = vector.multi_reduction <add>, %90, %cst_50 [1] : vector<2x32xf32> to vector<2xf32>
    %92 = vector.shape_cast %91 : vector<2xf32> to vector<2x1xf32>
    %93 = arith.addf %87, %92 : vector<2x1xf32>
    %c0_51 = arith.constant 0 : index
    %c0_52 = arith.constant 0 : index
    %94 = vector.load %arg18[%c0_51, %c0_52] : memref<1x32xf32, #tpu.memory_space<vmem>>, vector<1x32xf32>
    %95 = vector.broadcast %94 : vector<1x32xf32> to vector<2x32xf32>
    %96 = arith.mulf %46, %95 : vector<2x32xf32>
    %cst_53 = arith.constant dense<0.000000e+00> : vector<2xf32>
    %97 = vector.multi_reduction <add>, %96, %cst_53 [1] : vector<2x32xf32> to vector<2xf32>
    %98 = vector.shape_cast %97 : vector<2xf32> to vector<2x1xf32>
    %99 = arith.addf %93, %98 : vector<2x1xf32>
    %c0_54 = arith.constant 0 : index
    %c0_55 = arith.constant 0 : index
    %100 = vector.load %arg19[%c0_54, %c0_55] : memref<1x32xf32, #tpu.memory_space<vmem>>, vector<1x32xf32>
    %101 = vector.broadcast %100 : vector<1x32xf32> to vector<2x32xf32>
    %102 = arith.mulf %11, %101 : vector<2x32xf32>
    %cst_56 = arith.constant dense<0.000000e+00> : vector<2xf32>
    %103 = vector.multi_reduction <add>, %102, %cst_56 [1] : vector<2x32xf32> to vector<2xf32>
    %104 = vector.shape_cast %103 : vector<2xf32> to vector<2x1xf32>
    %105 = arith.addf %99, %104 : vector<2x1xf32>
    %c0_57 = arith.constant 0 : index
    %c0_58 = arith.constant 0 : index
    %106 = memref.load %arg23[%c0_57, %c0_58] : memref<1x1xf32, #tpu.memory_space<smem>>
    %107 = vector.broadcast %106 : f32 to vector<2x1xf32>
    %108 = arith.addf %105, %107 : vector<2x1xf32>
    %109 = arith.negf %108 : vector<2x1xf32>
    %110 = math.exp %109 : vector<2x1xf32>
    %cst_59 = arith.constant 1.000000e+00 : f32
    %111 = vector.broadcast %cst_59 : f32 to vector<2x1xf32>
    %112 = arith.addf %111, %110 : vector<2x1xf32>
    %113 = arith.divf %111, %112 : vector<2x1xf32>
    %114 = arith.truncf %48 : vector<2x32xf32> to vector<2x32xbf16>
    %c0_60 = arith.constant 0 : index
    %c0_61 = arith.constant 0 : index
    %115 = vector.load %arg20[%c0_60, %c0_61] : memref<32x32xbf16, #tpu.memory_space<vmem>>, vector<32x32xbf16>
    %cst_62 = arith.constant dense<0.000000e+00> : vector<2x32xf32>
    %116 = tpu.matmul %114, %115, %cst_62 {dimension_numbers = #tpu.dot_dimension_numbers<[1], [0], [0], [1], [0, 0, 1, 1], [], []>} : vector<2x32xbf16>, vector<32x32xbf16>, vector<2x32xf32> -> vector<2x32xf32>
    %117 = arith.truncf %82 : vector<2x64xf32> to vector<2x64xbf16>
    %c0_63 = arith.constant 0 : index
    %c0_64 = arith.constant 0 : index
    %118 = vector.load %arg21[%c0_63, %c0_64] : memref<64x32xbf16, #tpu.memory_space<vmem>>, vector<64x32xbf16>
    %cst_65 = arith.constant dense<0.000000e+00> : vector<2x32xf32>
    %119 = tpu.matmul %117, %118, %cst_65 {dimension_numbers = #tpu.dot_dimension_numbers<[1], [0], [0], [1], [0, 0, 1, 1], [], []>} : vector<2x64xbf16>, vector<64x32xbf16>, vector<2x32xf32> -> vector<2x32xf32>
    %120 = arith.addf %116, %119 : vector<2x32xf32>
    %c0_66 = arith.constant 0 : index
    %c0_67 = arith.constant 0 : index
    %121 = vector.load %arg22[%c0_66, %c0_67] : memref<1x32xf32, #tpu.memory_space<vmem>>, vector<1x32xf32>
    %122 = vector.broadcast %121 : vector<1x32xf32> to vector<2x32xf32>
    %123 = arith.addf %120, %122 : vector<2x32xf32>
    %cst_68 = arith.constant 0.000000e+00 : f32
    %124 = vector.broadcast %cst_68 : f32 to vector<2x32xf32>
    %125 = arith.maximumf %123, %124 : vector<2x32xf32>
    %cst_69 = arith.constant 0.000000e+00 : f32
    %126 = vector.broadcast %cst_69 : f32 to vector<2x96xf32>
    %127 = tpu.concatenate %48, %126 in 1 : vector<2x32xf32>, vector<2x96xf32> -> vector<2x128xf32>
    %c0_70 = arith.constant 0 : index
    %c0_71 = arith.constant 0 : index
    %128 = vector.load %arg24[%c0_70, %c0_71] : memref<2x768xf32, #tpu.memory_space<vmem>>, vector<2x128xf32>
    tpu.vector_store %arg24[%c0_70, %c0_71], %127 {strides = array<i32>} : memref<2x768xf32, #tpu.memory_space<vmem>>, vector<2x128xf32>,
    %cst_72 = arith.constant 0.000000e+00 : f32
    %129 = vector.broadcast %cst_72 : f32 to vector<2x96xf32>
    %130 = tpu.concatenate %46, %129 in 1 : vector<2x32xf32>, vector<2x96xf32> -> vector<2x128xf32>
    %c0_73 = arith.constant 0 : index
    %c128 = arith.constant 128 : index
    %131 = vector.load %arg24[%c0_73, %c128] : memref<2x768xf32, #tpu.memory_space<vmem>>, vector<2x128xf32>
    tpu.vector_store %arg24[%c0_73, %c128], %130 {strides = array<i32>} : memref<2x768xf32, #tpu.memory_space<vmem>>, vector<2x128xf32>,
    %cst_74 = arith.constant 0.000000e+00 : f32
    %132 = vector.broadcast %cst_74 : f32 to vector<2x64xf32>
    %133 = tpu.concatenate %82, %132 in 1 : vector<2x64xf32>, vector<2x64xf32> -> vector<2x128xf32>
    %c0_75 = arith.constant 0 : index
    %c256 = arith.constant 256 : index
    %134 = vector.load %arg24[%c0_75, %c256] : memref<2x768xf32, #tpu.memory_space<vmem>>, vector<2x128xf32>
    tpu.vector_store %arg24[%c0_75, %c256], %133 {strides = array<i32>} : memref<2x768xf32, #tpu.memory_space<vmem>>, vector<2x128xf32>,
    %cst_76 = arith.constant 0.000000e+00 : f32
    %135 = vector.broadcast %cst_76 : f32 to vector<2x120xf32>
    %136 = tpu.concatenate %77, %135 in 1 : vector<2x8xf32>, vector<2x120xf32> -> vector<2x128xf32>
    %c0_77 = arith.constant 0 : index
    %c384 = arith.constant 384 : index
    %137 = vector.load %arg24[%c0_77, %c384] : memref<2x768xf32, #tpu.memory_space<vmem>>, vector<2x128xf32>
    tpu.vector_store %arg24[%c0_77, %c384], %136 {strides = array<i32>} : memref<2x768xf32, #tpu.memory_space<vmem>>, vector<2x128xf32>,
    %cst_78 = arith.constant 0.000000e+00 : f32
    %138 = vector.broadcast %cst_78 : f32 to vector<2x127xf32>
    %139 = tpu.concatenate %113, %138 in 1 : vector<2x1xf32>, vector<2x127xf32> -> vector<2x128xf32>
    %c0_79 = arith.constant 0 : index
    %c512 = arith.constant 512 : index
    %140 = vector.load %arg24[%c0_79, %c512] : memref<2x768xf32, #tpu.memory_space<vmem>>, vector<2x128xf32>
    tpu.vector_store %arg24[%c0_79, %c512], %139 {strides = array<i32>} : memref<2x768xf32, #tpu.memory_space<vmem>>, vector<2x128xf32>,
    %cst_80 = arith.constant 0.000000e+00 : f32
    %141 = vector.broadcast %cst_80 : f32 to vector<2x96xf32>
    %142 = tpu.concatenate %125, %141 in 1 : vector<2x32xf32>, vector<2x96xf32> -> vector<2x128xf32>
    %c0_81 = arith.constant 0 : index
    %c640 = arith.constant 640 : index
    %143 = vector.load %arg24[%c0_81, %c640] : memref<2x768xf32, #tpu.memory_space<vmem>>, vector<2x128xf32>
    tpu.vector_store %arg24[%c0_81, %c640], %142 {strides = array<i32>} : memref<2x768xf32, #tpu.memory_space<vmem>>, vector<2x128xf32>,
    return
  }
}

</mosaic_0001>

<llo_original>
// kernel: tpu_custom_call.1
$region0: #{tpu_custom_call.1}
  #allocation0 [shape = 'u32[]', space=smem, size = 0x4, offset = 0x4, fixed_abs, tag = 'smem constant byte address 0x4 - core index']
  #allocation1 [shape = 'u32[144,128]{1,0:T(1,128)}', space=vmem, size = 0x12000, scoped, tag = 'internal scratch']
  #allocation2 [shape = 'f32[1,1]{1,0:T(1,128)S(6)}', space=smem, size = 0x200, scoped, tag = 'scoped memory for tpu_custom_call.1']
  %s0 = inlined_call_operand.hbm [shape: f32[2,32], index: 0, kind: input, shape index: {}]
  %s1 = inlined_call_operand.hbm [shape: f32[2,32], index: 1, kind: input, shape index: {}]
  %s2 = inlined_call_operand.hbm [shape: f32[2,32], index: 2, kind: input, shape index: {}]
  %s3 = inlined_call_operand.vmem [shape: f32[2,8,64], index: 3, kind: input, shape index: {}]
  %s4 = inlined_call_operand.vmem [shape: f32[2,8,64], index: 4, kind: input, shape index: {}]
  %s5 = inlined_call_operand.hbm [shape: f32[2,8], index: 5, kind: input, shape index: {}]
  %s6 = inlined_call_operand.hbm [shape: f32[2,64], index: 6, kind: input, shape index: {}]
  %s7 = inlined_call_operand.vmem [shape: bf16[64,32], index: 7, kind: input, shape index: {}]
  %s8 = inlined_call_operand.vmem [shape: bf16[32,32], index: 8, kind: input, shape index: {}]
  %s9 = inlined_call_operand.vmem [shape: f32[1,32], index: 9, kind: input, shape index: {}]
  %s10 = inlined_call_operand.vmem [shape: bf16[32,128], index: 10, kind: input, shape index: {}]
  %s11 = inlined_call_operand.vmem [shape: bf16[32,128], index: 11, kind: input, shape index: {}]
  %s12 = inlined_call_operand.hbm [shape: f32[1,128], index: 12, kind: input, shape index: {}]
  %s13 = inlined_call_operand.vmem [shape: bf16[32,64], index: 13, kind: input, shape index: {}]
  %s14 = inlined_call_operand.vmem [shape: bf16[32,64], index: 14, kind: input, shape index: {}]
  %s15 = inlined_call_operand.hbm [shape: f32[1,64], index: 15, kind: input, shape index: {}]
  %s16 = inlined_call_operand.hbm [shape: f32[1,64], index: 16, kind: input, shape index: {}]
  %s17 = inlined_call_operand.hbm [shape: f32[1,32], index: 17, kind: input, shape index: {}]
  %s18 = inlined_call_operand.vmem [shape: f32[1,32], index: 18, kind: input, shape index: {}]
  %s19 = inlined_call_operand.vmem [shape: f32[1,32], index: 19, kind: input, shape index: {}]
  %s20 = inlined_call_operand.vmem [shape: bf16[32,32], index: 20, kind: input, shape index: {}]
  %s21 = inlined_call_operand.vmem [shape: bf16[64,32], index: 21, kind: input, shape index: {}]
  %s22 = inlined_call_operand.vmem [shape: f32[1,32], index: 22, kind: input, shape index: {}]
  %s23 = inlined_call_operand.<no memory space> [shape: f32[1,1], index: 23, kind: input, shape index: {}]
  %s24 = inlined_call_operand.hbm [shape: f32[2,768], index: 24, kind: output, shape index: {}]
  %s25 = sld [smem:[#allocation0]]
  $region142: #{tpu_custom_call.1} parent=0
    _
  %s27 = ssub.s32 1, %s25
  %s28 = scalar_select 0, %s27, %s25
  %29 = sst [smem:[#allocation2]] %s23
  $region1: #{tpu_custom_call.1} parent=0
    #allocation3 [shape = 'u8[1024]{0}', space=vmem, size = 0x400, scoped, tag = 'input window, operand 0, single buffered']
    #allocation4 [shape = 's32[1]{0}', space=sflag, size = 0x4, scoped, tag = 'scoped memory for tpu_custom_call.1']
    #allocation5 [shape = 's32[1]{0}', space=sflag, size = 0x4, scoped, tag = 'scoped memory for tpu_custom_call.1']
    #allocation6 [shape = 'u8[1024]{0}', space=vmem, size = 0x400, scoped, tag = 'input window, operand 1, single buffered']
    #allocation7 [shape = 's32[1]{0}', space=sflag, size = 0x4, scoped, tag = 'scoped memory for tpu_custom_call.1']
    #allocation8 [shape = 'u8[1024]{0}', space=vmem, size = 0x400, scoped, tag = 'input window, operand 2, single buffered']
    #allocation9 [shape = 'u8[1024]{0}', space=vmem, size = 0x400, scoped, tag = 'input window, operand 5, single buffered']
    #allocation10 [shape = 's32[1]{0}', space=sflag, size = 0x4, scoped, tag = 'scoped memory for tpu_custom_call.1']
    #allocation11 [shape = 'u8[1024]{0}', space=vmem, size = 0x400, scoped, tag = 'input window, operand 6, single buffered']
    #allocation12 [shape = 'u8[512]{0}', space=vmem, size = 0x400, scoped, tag = 'input window, operand 12, single buffered']
    #allocation13 [shape = 's32[1]{0}', space=sflag, size = 0x4, scoped, tag = 'scoped memory for tpu_custom_call.1']
    #allocation14 [shape = 'u8[512]{0}', space=vmem, size = 0x400, scoped, tag = 'input window, operand 15, single buffered']
    #allocation15 [shape = 'u8[512]{0}', space=vmem, size = 0x400, scoped, tag = 'input window, operand 16, single buffered']
    #allocation16 [shape = 's32[1]{0}', space=sflag, size = 0x4, scoped, tag = 'scoped memory for tpu_custom_call.1']
    #allocation17 [shape = 'u8[512]{0}', space=vmem, size = 0x400, scoped, tag = 'input window, operand 17, single buffered']
    #allocation18 [shape = 'u8[6144]{0}', space=vmem, size = 0x1800, scoped, tag = 'output window, operand 0, single buffered']
    %30 = vsyncpa [#allocation4], 0
    %31 = vsyncpa [#allocation7], 0
    %32 = vsyncpa [#allocation10], 0
    %33 = vsyncpa [#allocation13], 0
    %34 = vsyncpa [#allocation16], 0
    %35 = vsyncpa [#allocation5], 0
    // Predicated region
    $region2: #{tpu_custom_call.1} parent=1 // pred_check
      _
    $region3: #{tpu_custom_call.1} parent=1 // pred_check_branch
      %37 = sbr.rel (0) target = $region5
    $region4: #{tpu_custom_call.1} parent=1 // pred_region
      %s39 = ssub.s32 32, 32
      %40 = vsyncadd [#allocation4], %s39
      %s42 = sshll.u32 [#allocation3], 4
      %s43 = int_to_ptr.vmem [resolvable:$true] %s42
      %45 = dma.hbm_to_vmem [thread:$0]  %s0, 32, %s43, [#allocation4]
    $region5: #{tpu_custom_call.1} parent=1 // pred_fallthru
      _
    // Predicated region
    $region6: #{tpu_custom_call.1} parent=1 // pred_check
      _
    $region7: #{tpu_custom_call.1} parent=1 // pred_check_branch
      %47 = sbr.rel (0) target = $region9
    $region8: #{tpu_custom_call.1} parent=1 // pred_region
      %s49 = ssub.s32 32, 32
      %50 = vsyncadd [#allocation7], %s49
      %s52 = sshll.u32 [#allocation6], 4
      %s53 = int_to_ptr.vmem [resolvable:$true] %s52
      %55 = dma.hbm_to_vmem [thread:$0]  %s1, 32, %s53, [#allocation7]
    $region9: #{tpu_custom_call.1} parent=1 // pred_fallthru
      _
    // Predicated region
    $region10: #{tpu_custom_call.1} parent=1 // pred_check
      _
    $region11: #{tpu_custom_call.1} parent=1 // pred_check_branch
      %57 = sbr.rel (0) target = $region13
    $region12: #{tpu_custom_call.1} parent=1 // pred_region
      %s59 = ssub.s32 32, 32
      %60 = vsyncadd [#allocation7], %s59
      %s62 = sshll.u32 [#allocation8], 4
      %s63 = int_to_ptr.vmem [resolvable:$true] %s62
      %65 = dma.hbm_to_vmem [thread:$0]  %s2, 32, %s63, [#allocation7]
    $region13: #{tpu_custom_call.1} parent=1 // pred_fallthru
      _
    // Predicated region
    $region14: #{tpu_custom_call.1} parent=1 // pred_check
      _
    $region15: #{tpu_custom_call.1} parent=1 // pred_check_branch
      %67 = sbr.rel (0) target = $region17
    $region16: #{tpu_custom_call.1} parent=1 // pred_region
      _
    $region17: #{tpu_custom_call.1} parent=1 // pred_fallthru
      _
    // Predicated region
    $region18: #{tpu_custom_call.1} parent=1 // pred_check
      _
    $region19: #{tpu_custom_call.1} parent=1 // pred_check_branch
      %69 = sbr.rel (0) target = $region21
    $region20: #{tpu_custom_call.1} parent=1 // pred_region
      _
    $region21: #{tpu_custom_call.1} parent=1 // pred_fallthru
      _
    // Predicated region
    $region22: #{tpu_custom_call.1} parent=1 // pred_check
      _
    $region23: #{tpu_custom_call.1} parent=1 // pred_check_branch
      %71 = sbr.rel (0) target = $region25
    $region24: #{tpu_custom_call.1} parent=1 // pred_region
      %s73 = ssub.s32 32, 32
      %74 = vsyncadd [#allocation10], %s73
      %s76 = sshll.u32 [#allocation9], 4
      %s77 = int_to_ptr.vmem [resolvable:$true] %s76
      %79 = dma.hbm_to_vmem [thread:$0]  %s5, 32, %s77, [#allocation10]
    $region25: #{tpu_custom_call.1} parent=1 // pred_fallthru
      _
    // Predicated region
    $region26: #{tpu_custom_call.1} parent=1 // pred_check
      _
    $region27: #{tpu_custom_call.1} parent=1 // pred_check_branch
      %81 = sbr.rel (0) target = $region29
    $region28: #{tpu_custom_call.1} parent=1 // pred_region
      %s83 = ssub.s32 32, 32
      %84 = vsyncadd [#allocation10], %s83
      %s86 = sshll.u32 [#allocation11], 4
      %s87 = int_to_ptr.vmem [resolvable:$true] %s86
      %89 = dma.hbm_to_vmem [thread:$0]  %s6, 32, %s87, [#allocation10]
    $region29: #{tpu_custom_call.1} parent=1 // pred_fallthru
      _
    // Predicated region
    $region30: #{tpu_custom_call.1} parent=1 // pred_check
      _
    $region31: #{tpu_custom_call.1} parent=1 // pred_check_branch
      %91 = sbr.rel (0) target = $region33
    $region32: #{tpu_custom_call.1} parent=1 // pred_region
      _
    $region33: #{tpu_custom_call.1} parent=1 // pred_fallthru
      _
    // Predicated region
    $region34: #{tpu_custom_call.1} parent=1 // pred_check
      _
    $region35: #{tpu_custom_call.1} parent=1 // pred_check_branch
      %93 = sbr.rel (0) target = $region37
    $region36: #{tpu_custom_call.1} parent=1 // pred_region
      _
    $region37: #{tpu_custom_call.1} parent=1 // pred_fallthru
      _
    // Predicated region
    $region38: #{tpu_custom_call.1} parent=1 // pred_check
      _
    $region39: #{tpu_custom_call.1} parent=1 // pred_check_branch
      %95 = sbr.rel (0) target = $region41
    $region40: #{tpu_custom_call.1} parent=1 // pred_region
      _
    $region41: #{tpu_custom_call.1} parent=1 // pred_fallthru
      _
    // Predicated region
    $region42: #{tpu_custom_call.1} parent=1 // pred_check
      _
    $region43: #{tpu_custom_call.1} parent=1 // pred_check_branch
      %97 = sbr.rel (0) target = $region45
    $region44: #{tpu_custom_call.1} parent=1 // pred_region
      _
    $region45: #{tpu_custom_call.1} parent=1 // pred_fallthru
      _
    // Predicated region
    $region46: #{tpu_custom_call.1} parent=1 // pred_check
      _
    $region47: #{tpu_custom_call.1} parent=1 // pred_check_branch
      %99 = sbr.rel (0) target = $region49
    $region48: #{tpu_custom_call.1} parent=1 // pred_region
      _
    $region49: #{tpu_custom_call.1} parent=1 // pred_fallthru
      _
    // Predicated region
    $region50: #{tpu_custom_call.1} parent=1 // pred_check
      _
    $region51: #{tpu_custom_call.1} parent=1 // pred_check_branch
      %101 = sbr.rel (0) target = $region53
    $region52: #{tpu_custom_call.1} parent=1 // pred_region
      %s103 = ssub.s32 16, 16
      %104 = vsyncadd [#allocation13], %s103
      %s106 = sshll.u32 [#allocation12], 4
      %s107 = int_to_ptr.vmem [resolvable:$true] %s106
      %109 = dma.hbm_to_vmem [thread:$0]  %s12, 16, %s107, [#allocation13]
    $region53: #{tpu_custom_call.1} parent=1 // pred_fallthru
      _
    // Predicated region
    $region54: #{tpu_custom_call.1} parent=1 // pred_check
      _
    $region55: #{tpu_custom_call.1} parent=1 // pred_check_branch
      %111 = sbr.rel (0) target = $region57
    $region56: #{tpu_custom_call.1} parent=1 // pred_region
      _
    $region57: #{tpu_custom_call.1} parent=1 // pred_fallthru
      _
    // Predicated region
    $region58: #{tpu_custom_call.1} parent=1 // pred_check
      _
    $region59: #{tpu_custom_call.1} parent=1 // pred_check_branch
      %113 = sbr.rel (0) target = $region61
    $region60: #{tpu_custom_call.1} parent=1 // pred_region
      _
    $region61: #{tpu_custom_call.1} parent=1 // pred_fallthru
      _
    // Predicated region
    $region62: #{tpu_custom_call.1} parent=1 // pred_check
      _
    $region63: #{tpu_custom_call.1} parent=1 // pred_check_branch
      %115 = sbr.rel (0) target = $region65
    $region64: #{tpu_custom_call.1} parent=1 // pred_region
      %s117 = ssub.s32 16, 16
      %118 = vsyncadd [#allocation13], %s117
      %s120 = sshll.u32 [#allocation14], 4
      %s121 = int_to_ptr.vmem [resolvable:$true] %s120
      %123 = dma.hbm_to_vmem [thread:$0]  %s15, 16, %s121, [#allocation13]
    $region65: #{tpu_custom_call.1} parent=1 // pred_fallthru
      _
    // Predicated region
    $region66: #{tpu_custom_call.1} parent=1 // pred_check
      _
    $region67: #{tpu_custom_call.1} parent=1 // pred_check_branch
      %125 = sbr.rel (0) target = $region69
    $region68: #{tpu_custom_call.1} parent=1 // pred_region
      %s127 = ssub.s32 16, 16
      %128 = vsyncadd [#allocation16], %s127
      %s130 = sshll.u32 [#allocation15], 4
      %s131 = int_to_ptr.vmem [resolvable:$true] %s130
      %133 = dma.hbm_to_vmem [thread:$0]  %s16, 16, %s131, [#allocation16]
    $region69: #{tpu_custom_call.1} parent=1 // pred_fallthru
      _
    // Predicated region
    $region70: #{tpu_custom_call.1} parent=1 // pred_check
      _
    $region71: #{tpu_custom_call.1} parent=1 // pred_check_branch
      %135 = sbr.rel (0) target = $region73
    $region72: #{tpu_custom_call.1} parent=1 // pred_region
      %s137 = ssub.s32 16, 16
      %138 = vsyncadd [#allocation16], %s137
      %s140 = sshll.u32 [#allocation17], 4
      %s141 = int_to_ptr.vmem [resolvable:$true] %s140
      %143 = dma.hbm_to_vmem [thread:$0]  %s17, 16, %s141, [#allocation16]
    $region73: #{tpu_custom_call.1} parent=1 // pred_fallthru
      _
    // Predicated region
    $region74: #{tpu_custom_call.1} parent=1 // pred_check
      _
    $region75: #{tpu_custom_call.1} parent=1 // pred_check_branch
      %145 = sbr.rel (0) target = $region77
    $region76: #{tpu_custom_call.1} parent=1 // pred_region
      _
    $region77: #{tpu_custom_call.1} parent=1 // pred_fallthru
      _
    // Predicated region
    $region78: #{tpu_custom_call.1} parent=1 // pred_check
      _
    $region79: #{tpu_custom_call.1} parent=1 // pred_check_branch
      %147 = sbr.rel (0) target = $region81
    $region80: #{tpu_custom_call.1} parent=1 // pred_region
      _
    $region81: #{tpu_custom_call.1} parent=1 // pred_fallthru
      _
    // Predicated region
    $region82: #{tpu_custom_call.1} parent=1 // pred_check
      _
    $region83: #{tpu_custom_call.1} parent=1 // pred_check_branch
      %149 = sbr.rel (0) target = $region85
    $region84: #{tpu_custom_call.1} parent=1 // pred_region
      _
    $region85: #{tpu_custom_call.1} parent=1 // pred_fallthru
      _
    // Predicated region
    $region86: #{tpu_custom_call.1} parent=1 // pred_check
      _
    $region87: #{tpu_custom_call.1} parent=1 // pred_check_branch
      %151 = sbr.rel (0) target = $region89
    $region88: #{tpu_custom_call.1} parent=1 // pred_region
      _
    $region89: #{tpu_custom_call.1} parent=1 // pred_fallthru
      _
    // Predicated region
    $region90: #{tpu_custom_call.1} parent=1 // pred_check
      _
    $region91: #{tpu_custom_call.1} parent=1 // pred_check_branch
      %153 = sbr.rel (0) target = $region93
    $region92: #{tpu_custom_call.1} parent=1 // pred_region
      _
    $region93: #{tpu_custom_call.1} parent=1 // pred_fallthru
      _
    // Predicated region
    $region94: #{tpu_custom_call.1} parent=1 // pred_check
      _
    $region95: #{tpu_custom_call.1} parent=1 // pred_check_branch
      %155 = sbr.rel (0) target = $region97
    $region96: #{tpu_custom_call.1} parent=1 // pred_region
      _
    $region97: #{tpu_custom_call.1} parent=1 // pred_fallthru
      _
    // Predicated region
    $region98: #{tpu_custom_call.1} parent=1 // pred_check
      _
    $region99: #{tpu_custom_call.1} parent=1 // pred_check_branch
      %157 = sbr.rel (0) target = $region101
    $region100: #{tpu_custom_call.1} parent=1 // pred_region
      %158 = dma.done [#allocation4], 32
    $region101: #{tpu_custom_call.1} parent=1 // pred_fallthru
      _
    // Predicated region
    $region102: #{tpu_custom_call.1} parent=1 // pred_check
      _
    $region103: #{tpu_custom_call.1} parent=1 // pred_check_branch
      %160 = sbr.rel (0) target = $region105
    $region104: #{tpu_custom_call.1} parent=1 // pred_region
      %161 = dma.done [#allocation7], 32
    $region105: #{tpu_custom_call.1} parent=1 // pred_fallthru
      _
    // Predicated region
    $region106: #{tpu_custom_call.1} parent=1 // pred_check
      _
    $region107: #{tpu_custom_call.1} parent=1 // pred_check_branch
      %163 = sbr.rel (0) target = $region109
    $region108: #{tpu_custom_call.1} parent=1 // pred_region
      %164 = dma.done [#allocation7], 32
    $region109: #{tpu_custom_call.1} parent=1 // pred_fallthru
      _
    // Predicated region
    $region110: #{tpu_custom_call.1} parent=1 // pred_check
      _
    $region111: #{tpu_custom_call.1} parent=1 // pred_check_branch
      %166 = sbr.rel (0) target = $region113
    $region112: #{tpu_custom_call.1} parent=1 // pred_region
      %167 = dma.done [#allocation10], 32
    $region113: #{tpu_custom_call.1} parent=1 // pred_fallthru
      _
    // Predicated region
    $region114: #{tpu_custom_call.1} parent=1 // pred_check
      _
    $region115: #{tpu_custom_call.1} parent=1 // pred_check_branch
      %169 = sbr.rel (0) target = $region117
    $region116: #{tpu_custom_call.1} parent=1 // pred_region
      %170 = dma.done [#allocation10], 32
    $region117: #{tpu_custom_call.1} parent=1 // pred_fallthru
      _
    // Predicated region
    $region118: #{tpu_custom_call.1} parent=1 // pred_check
      _
    $region119: #{tpu_custom_call.1} parent=1 // pred_check_branch
      %172 = sbr.rel (0) target = $region121
    $region120: #{tpu_custom_call.1} parent=1 // pred_region
      %173 = dma.done [#allocation13], 16
    $region121: #{tpu_custom_call.1} parent=1 // pred_fallthru
      _
    // Predicated region
    $region122: #{tpu_custom_call.1} parent=1 // pred_check
      _
    $region123: #{tpu_custom_call.1} parent=1 // pred_check_branch
      %175 = sbr.rel (0) target = $region125
    $region124: #{tpu_custom_call.1} parent=1 // pred_region
      %176 = dma.done [#allocation13], 16
    $region125: #{tpu_custom_call.1} parent=1 // pred_fallthru
      _
    // Predicated region
    $region126: #{tpu_custom_call.1} parent=1 // pred_check
      _
    $region127: #{tpu_custom_call.1} parent=1 // pred_check_branch
      %178 = sbr.rel (0) target = $region129
    $region128: #{tpu_custom_call.1} parent=1 // pred_region
      %179 = dma.done [#allocation16], 16
    $region129: #{tpu_custom_call.1} parent=1 // pred_fallthru
      _
    // Predicated region
    $region130: #{tpu_custom_call.1} parent=1 // pred_check
      _
    $region131: #{tpu_custom_call.1} parent=1 // pred_check_branch
      %181 = sbr.rel (0) target = $region133
    $region132: #{tpu_custom_call.1} parent=1 // pred_region
      %182 = dma.done [#allocation16], 16
    $region133: #{tpu_custom_call.1} parent=1 // pred_fallthru
      _
    %v184 = vld [vmem:[#allocation11] sm:$0x3]
    %v185 = vpack.c.bf16 %v184, %v184
    %v186 = vld [vmem:[%s7] sm:$0xf]
    %v187 = vld [vmem:[%s7 + $0x4] sm:$0xf]
    %v188 = vld [vmem:[%s7 + $0x8] sm:$0xf]
    %v189 = vld [vmem:[%s7 + $0xc] sm:$0xf]
    %v190 = vld [vmem:[%s7 + $0x10] sm:$0xf]
    %v191 = vld [vmem:[%s7 + $0x14] sm:$0xf]
    %v192 = vld [vmem:[%s7 + $0x18] sm:$0xf]
    %v193 = vld [vmem:[%s7 + $0x1c] sm:$0xf]
    %v194 = vld [vmem:[#allocation3] sm:$0x3]
    %v195 = vpack.c.bf16 %v194, %v194
    %v196 = vld [vmem:[%s8] sm:$0xf]
    %v197 = vld [vmem:[%s8 + $0x4] sm:$0xf]
    %v198 = vld [vmem:[%s8 + $0x8] sm:$0xf]
    %v199 = vld [vmem:[%s8 + $0xc] sm:$0xf]
    %v204 = vunpack.c.l.b16 %v196
    %v205 = vunpack.c.l.b16 %v197
    %v206 = vunpack.c.l.b16 %v198
    %v207 = vunpack.c.l.b16 %v199
    %v208 = vpack.c.b16 %v205, %v204
    %v209 = vpack.c.b16 %v207, %v206
    %vm212 = vcmask 261120
    %v214 = vsel %vm212, %v195, 0
    %216 = vmatprep.subr.bf16.mxu0 0
    %217 = vmatpush1.bf16.msra.mxu0 0
    %218 = vmatprep.subr.bf16.mxu0 0
    %219 = vmatpush1.bf16.msra.mxu0 0
    %220 = vmatprep.subr.bf16.mxu0 0
    %221 = vmatpush1.bf16.msra.mxu0 0
    %222 = vmatprep.subr.bf16.mxu0 0
    %223 = vmatpush1.bf16.msra.mxu0 0
    %224 = vmatprep.subr.bf16.mxu0 0
    %225 = vmatpush1.bf16.msra.mxu0 0
    %226 = vmatprep.subr.bf16.mxu0 0
    %227 = vmatpush1.bf16.msra.mxu0 0
    %228 = vmatprep.subr.bf16.mxu0 0
    %229 = vmatpush1.bf16.msra.mxu0 %v209
    %230 = vmatprep.subr.bf16.mxu0 0
    %231 = vmatpush1.bf16.msra.mxu0 %v208
    %232 = vmatprep.subr.bf16.mxu0 0
    %233 = vmatpush2.bf16.msra.mxu0 0
    %234 = vmatprep.subr.bf16.mxu0 0
    %235 = vmatpush2.bf16.msra.mxu0 0
    %236 = vmatprep.subr.bf16.mxu0 0
    %237 = vmatpush2.bf16.msra.mxu0 0
    %238 = vmatprep.subr.bf16.mxu0 0
    %239 = vmatpush2.bf16.msra.mxu0 0
    %240 = vmatprep.subr.bf16.mxu0 0
    %241 = vmatpush2.bf16.msra.mxu0 0
    %242 = vmatprep.subr.bf16.mxu0 0
    %243 = vmatpush2.bf16.msra.mxu0 0
    %244 = vmatprep.subr.bf16.mxu0 0
    %245 = vmatpush2.bf16.msra.mxu0 0
    %246 = vmatprep.subr.bf16.mxu0 0
    %247 = vmatpush2.bf16.msra.mxu0 0
    %248 = vmatprep.mubr.bf16.mxu0 0
    %249 = vmatmul.mubr.bf16.gmra.mxu0 %v214
    %v250 = vpop.f32.mrf.mxu0
    %v251 = vadd.f32 0.0, %v250
    %v252 = vpop.f32.mrf.mxu0
    %v253 = vpop.f32.mrf.mxu0
    %v254 = vpop.f32.mrf.mxu0
    %255 = vdwg.mxu0
    %v264 = vunpack.c.l.b16 %v186
    %v265 = vunpack.c.l.b16 %v187
    %v266 = vunpack.c.l.b16 %v188
    %v267 = vunpack.c.l.b16 %v189
    %v268 = vunpack.c.l.b16 %v190
    %v269 = vunpack.c.l.b16 %v191
    %v270 = vunpack.c.l.b16 %v192
    %v271 = vunpack.c.l.b16 %v193
    %v272 = vpack.c.b16 %v265, %v264
    %v273 = vpack.c.b16 %v267, %v266
    %v274 = vpack.c.b16 %v269, %v268
    %v275 = vpack.c.b16 %v271, %v270
    %vm280 = vcmask 523264
    %v282 = vsel %vm280, %v185, 0
    %284 = vmatprep.subr.bf16.mxu0 0
    %285 = vmatpush1.bf16.msra.mxu0 0
    %286 = vmatprep.subr.bf16.mxu0 0
    %287 = vmatpush1.bf16.msra.mxu0 0
    %288 = vmatprep.subr.bf16.mxu0 0
    %289 = vmatpush1.bf16.msra.mxu0 0
    %290 = vmatprep.subr.bf16.mxu0 0
    %291 = vmatpush1.bf16.msra.mxu0 0
    %292 = vmatprep.subr.bf16.mxu0 0
    %293 = vmatpush1.bf16.msra.mxu0 %v275
    %294 = vmatprep.subr.bf16.mxu0 0
    %295 = vmatpush1.bf16.msra.mxu0 %v274
    %296 = vmatprep.subr.bf16.mxu0 0
    %297 = vmatpush1.bf16.msra.mxu0 %v273
    %298 = vmatprep.subr.bf16.mxu0 0
    %299 = vmatpush1.bf16.msra.mxu0 %v272
    %300 = vmatprep.subr.bf16.mxu0 0
    %301 = vmatpush2.bf16.msra.mxu0 0
    %302 = vmatprep.subr.bf16.mxu0 0
    %303 = vmatpush2.bf16.msra.mxu0 0
    %304 = vmatprep.subr.bf16.mxu0 0
    %305 = vmatpush2.bf16.msra.mxu0 0
    %306 = vmatprep.subr.bf16.mxu0 0
    %307 = vmatpush2.bf16.msra.mxu0 0
    %308 = vmatprep.subr.bf16.mxu0 0
    %309 = vmatpush2.bf16.msra.mxu0 0
    %310 = vmatprep.subr.bf16.mxu0 0
    %311 = vmatpush2.bf16.msra.mxu0 0
    %312 = vmatprep.subr.bf16.mxu0 0
    %313 = vmatpush2.bf16.msra.mxu0 0
    %314 = vmatprep.subr.bf16.mxu0 0
    %315 = vmatpush2.bf16.msra.mxu0 0
    %316 = vmatprep.mubr.bf16.mxu0 0
    %317 = vmatmul.mubr.bf16.gmra.mxu0 %v282
    %v318 = vpop.f32.mrf.mxu0
    %v319 = vadd.f32 %v251, %v318
    %v320 = vpop.f32.mrf.mxu0
    %v321 = vpop.f32.mrf.mxu0
    %v322 = vpop.f32.mrf.mxu0
    %323 = vdwg.mxu0
    %v324 = vld [vmem:[%s9] sm:$0x1]
    %v326 = vlaneseq
    %v327 = vshrl.u32 %v326, 7
    %v328 = vsub.s32 0, %v327
    %v329 = vrot.slane %v324, %v328
    %v331 = vadd.f32 %v319, %v329
    %v332 = vpack.c.bf16 %v331, %v331
    %v333 = vld [vmem:[%s10] sm:$0xf]
    %v334 = vld [vmem:[%s10 + $0x4] sm:$0xf]
    %v335 = vld [vmem:[%s10 + $0x8] sm:$0xf]
    %v336 = vld [vmem:[%s10 + $0xc] sm:$0xf]
    %v337 = vld [vmem:[#allocation6] sm:$0x3]
    %v338 = vpack.c.bf16 %v337, %v337
    %v339 = vld [vmem:[%s11] sm:$0xf]
    %v340 = vld [vmem:[%s11 + $0x4] sm:$0xf]
    %v341 = vld [vmem:[%s11 + $0x8] sm:$0xf]
    %v342 = vld [vmem:[%s11 + $0xc] sm:$0xf]
    %v347 = vunpack.c.l.b16 %v339
    %v348 = vunpack.c.l.b16 %v340
    %v349 = vunpack.c.l.b16 %v341
    %v350 = vunpack.c.l.b16 %v342
    %v351 = vpack.c.b16 %v348, %v347
    %v352 = vpack.c.b16 %v350, %v349
    %v356 = vsel %vm212, %v338, 0
    %358 = vmatprep.subr.bf16.mxu0 0
    %359 = vmatpush1.bf16.msra.mxu0 0
    %360 = vmatprep.subr.bf16.mxu0 0
    %361 = vmatpush1.bf16.msra.mxu0 0
    %362 = vmatprep.subr.bf16.mxu0 0
    %363 = vmatpush1.bf16.msra.mxu0 0
    %364 = vmatprep.subr.bf16.mxu0 0
    %365 = vmatpush1.bf16.msra.mxu0 0
    %366 = vmatprep.subr.bf16.mxu0 0
    %367 = vmatpush1.bf16.msra.mxu0 0
    %368 = vmatprep.subr.bf16.mxu0 0
    %369 = vmatpush1.bf16.msra.mxu0 0
    %370 = vmatprep.subr.bf16.mxu0 0
    %371 = vmatpush1.bf16.msra.mxu0 %v352
    %372 = vmatprep.subr.bf16.mxu0 0
    %373 = vmatpush1.bf16.msra.mxu0 %v351
    %374 = vmatprep.subr.bf16.mxu0 0
    %375 = vmatpush2.bf16.msra.mxu0 0
    %376 = vmatprep.subr.bf16.mxu0 0
    %377 = vmatpush2.bf16.msra.mxu0 0
    %378 = vmatprep.subr.bf16.mxu0 0
    %379 = vmatpush2.bf16.msra.mxu0 0
    %380 = vmatprep.subr.bf16.mxu0 0
    %381 = vmatpush2.bf16.msra.mxu0 0
    %382 = vmatprep.subr.bf16.mxu0 0
    %383 = vmatpush2.bf16.msra.mxu0 0
    %384 = vmatprep.subr.bf16.mxu0 0
    %385 = vmatpush2.bf16.msra.mxu0 0
    %386 = vmatprep.subr.bf16.mxu0 0
    %387 = vmatpush2.bf16.msra.mxu0 0
    %388 = vmatprep.subr.bf16.mxu0 0
    %389 = vmatpush2.bf16.msra.mxu0 0
    %390 = vmatprep.mubr.bf16.mxu0 0
    %391 = vmatmul.mubr.bf16.gmra.mxu0 %v356
    %v392 = vpop.f32.mrf.mxu0
    %v393 = vadd.f32 0.0, %v392
    %v394 = vpop.f32.mrf.mxu0
    %v395 = vpop.f32.mrf.mxu0
    %v396 = vpop.f32.mrf.mxu0
    %397 = vdwg.mxu0
    %v402 = vunpack.c.l.b16 %v333
    %v403 = vunpack.c.l.b16 %v334
    %v404 = vunpack.c.l.b16 %v335
    %v405 = vunpack.c.l.b16 %v336
    %v406 = vpack.c.b16 %v403, %v402
    %v407 = vpack.c.b16 %v405, %v404
    %v411 = vsel %vm212, %v332, 0
    %413 = vmatprep.subr.bf16.mxu0 0
    %414 = vmatpush1.bf16.msra.mxu0 0
    %415 = vmatprep.subr.bf16.mxu0 0
    %416 = vmatpush1.bf16.msra.mxu0 0
    %417 = vmatprep.subr.bf16.mxu0 0
    %418 = vmatpush1.bf16.msra.mxu0 0
    %419 = vmatprep.subr.bf16.mxu0 0
    %420 = vmatpush1.bf16.msra.mxu0 0
    %421 = vmatprep.subr.bf16.mxu0 0
    %422 = vmatpush1.bf16.msra.mxu0 0
    %423 = vmatprep.subr.bf16.mxu0 0
    %424 = vmatpush1.bf16.msra.mxu0 0
    %425 = vmatprep.subr.bf16.mxu0 0
    %426 = vmatpush1.bf16.msra.mxu0 %v407
    %427 = vmatprep.subr.bf16.mxu0 0
    %428 = vmatpush1.bf16.msra.mxu0 %v406
    %429 = vmatprep.subr.bf16.mxu0 0
    %430 = vmatpush2.bf16.msra.mxu0 0
    %431 = vmatprep.subr.bf16.mxu0 0
    %432 = vmatpush2.bf16.msra.mxu0 0
    %433 = vmatprep.subr.bf16.mxu0 0
    %434 = vmatpush2.bf16.msra.mxu0 0
    %435 = vmatprep.subr.bf16.mxu0 0
    %436 = vmatpush2.bf16.msra.mxu0 0
    %437 = vmatprep.subr.bf16.mxu0 0
    %438 = vmatpush2.bf16.msra.mxu0 0
    %439 = vmatprep.subr.bf16.mxu0 0
    %440 = vmatpush2.bf16.msra.mxu0 0
    %441 = vmatprep.subr.bf16.mxu0 0
    %442 = vmatpush2.bf16.msra.mxu0 0
    %443 = vmatprep.subr.bf16.mxu0 0
    %444 = vmatpush2.bf16.msra.mxu0 0
    %445 = vmatprep.mubr.bf16.mxu0 0
    %446 = vmatmul.mubr.bf16.gmra.mxu0 %v411
    %v447 = vpop.f32.mrf.mxu0
    %v448 = vadd.f32 %v393, %v447
    %v449 = vpop.f32.mrf.mxu0
    %v450 = vpop.f32.mrf.mxu0
    %v451 = vpop.f32.mrf.mxu0
    %452 = vdwg.mxu0
    %v453 = vld [vmem:[#allocation12] sm:$0x1]
    %v455 = vlaneseq
    %v456 = vshrl.u32 %v455, 7
    %v457 = vsub.s32 0, %v456
    %v458 = vrot.slane %v453, %v457
    %v460 = vadd.f32 %v448, %v458
    %v461 = vxor.u32 %v460, 2147483648
    %v462 = vmul.f32 %v461, 1.442695
    %v463 = vpow.pop %v462
    %v464 = vadd.f32 %v463, 1.0
    %v465 = vrcp.pop %v464
    %v466 = vmul.f32 1.0, %v465
    %v467 = vtanh.pop %v460
    %v468 = vld [vmem:[#allocation8] sm:$0x3]
    %470 = vrot.lane.b32.xlu0 %v468, 32
    %v471 = vpop.permute.xlu0 %470
    %v473 = vmul.f32 %v466, %v471
    %475 = vrot.lane.b32.xlu0 %v467, 64
    %v476 = vpop.permute.xlu0 %475
    %v478 = vmul.f32 %v466, %v476
    %480 = vrot.lane.b32.xlu0 %v478, 32
    %v481 = vpop.permute.xlu0 %480
    %v483 = vadd.f32 %v473, %v481
    %v484 = vtanh.pop %v483
    %486 = vrot.lane.b32.xlu0 %v484, 64
    %v487 = vpop.permute.xlu0 %486
    %v489 = vmul.f32 %v466, %v487
    %v490 = vpack.c.bf16 %v489, %v489
    %v491 = vld [vmem:[%s13] sm:$0xf]
    %v492 = vld [vmem:[%s13 + $0x4] sm:$0xf]
    %v493 = vld [vmem:[%s13 + $0x8] sm:$0xf]
    %v494 = vld [vmem:[%s13 + $0xc] sm:$0xf]
    %v495 = vpack.c.bf16 %v483, %v483
    %v496 = vld [vmem:[%s14] sm:$0xf]
    %v497 = vld [vmem:[%s14 + $0x4] sm:$0xf]
    %v498 = vld [vmem:[%s14 + $0x8] sm:$0xf]
    %v499 = vld [vmem:[%s14 + $0xc] sm:$0xf]
    %501 = vrot.lane.b32.xlu0 %v495, 96
    %v502 = vpop.permute.xlu0 %501
    %v507 = vunpack.c.l.b16 %v496
    %v508 = vunpack.c.l.b16 %v497
    %v509 = vunpack.c.l.b16 %v498
    %v510 = vunpack.c.l.b16 %v499
    %v511 = vpack.c.b16 %v508, %v507
    %v512 = vpack.c.b16 %v510, %v509
    %v516 = vsel %vm212, %v502, 0
    %518 = vmatprep.subr.bf16.mxu0 0
    %519 = vmatpush1.bf16.msra.mxu0 0
    %520 = vmatprep.subr.bf16.mxu0 0
    %521 = vmatpush1.bf16.msra.mxu0 0
    %522 = vmatprep.subr.bf16.mxu0 0
    %523 = vmatpush1.bf16.msra.mxu0 0
    %524 = vmatprep.subr.bf16.mxu0 0
    %525 = vmatpush1.bf16.msra.mxu0 0
    %526 = vmatprep.subr.bf16.mxu0 0
    %527 = vmatpush1.bf16.msra.mxu0 0
    %528 = vmatprep.subr.bf16.mxu0 0
    %529 = vmatpush1.bf16.msra.mxu0 0
    %530 = vmatprep.subr.bf16.mxu0 0
    %531 = vmatpush1.bf16.msra.mxu0 %v512
    %532 = vmatprep.subr.bf16.mxu0 0
    %533 = vmatpush1.bf16.msra.mxu0 %v511
    %534 = vmatprep.subr.bf16.mxu0 0
    %535 = vmatpush2.bf16.msra.mxu0 0
    %536 = vmatprep.subr.bf16.mxu0 0
    %537 = vmatpush2.bf16.msra.mxu0 0
    %538 = vmatprep.subr.bf16.mxu0 0
    %539 = vmatpush2.bf16.msra.mxu0 0
    %540 = vmatprep.subr.bf16.mxu0 0
    %541 = vmatpush2.bf16.msra.mxu0 0
    %542 = vmatprep.subr.bf16.mxu0 0
    %543 = vmatpush2.bf16.msra.mxu0 0
    %544 = vmatprep.subr.bf16.mxu0 0
    %545 = vmatpush2.bf16.msra.mxu0 0
    %546 = vmatprep.subr.bf16.mxu0 0
    %547 = vmatpush2.bf16.msra.mxu0 0
    %548 = vmatprep.subr.bf16.mxu0 0
    %549 = vmatpush2.bf16.msra.mxu0 0
    %550 = vmatprep.mubr.bf16.mxu0 0
    %551 = vmatmul.mubr.bf16.gmra.mxu0 %v516
    %v552 = vpop.f32.mrf.mxu0
    %v553 = vadd.f32 0.0, %v552
    %v554 = vpop.f32.mrf.mxu0
    %v555 = vpop.f32.mrf.mxu0
    %v556 = vpop.f32.mrf.mxu0
    %557 = vdwg.mxu0
    %559 = vrot.lane.b32.xlu0 %v490, 32
    %v560 = vpop.permute.xlu0 %559
    %v565 = vunpack.c.l.b16 %v491
    %v566 = vunpack.c.l.b16 %v492
    %v567 = vunpack.c.l.b16 %v493
    %v568 = vunpack.c.l.b16 %v494
    %v569 = vpack.c.b16 %v566, %v565
    %v570 = vpack.c.b16 %v568, %v567
    %v574 = vsel %vm212, %v560, 0
    %576 = vmatprep.subr.bf16.mxu0 0
    %577 = vmatpush1.bf16.msra.mxu0 0
    %578 = vmatprep.subr.bf16.mxu0 0
    %579 = vmatpush1.bf16.msra.mxu0 0
    %580 = vmatprep.subr.bf16.mxu0 0
    %581 = vmatpush1.bf16.msra.mxu0 0
    %582 = vmatprep.subr.bf16.mxu0 0
    %583 = vmatpush1.bf16.msra.mxu0 0
    %584 = vmatprep.subr.bf16.mxu0 0
    %585 = vmatpush1.bf16.msra.mxu0 0
    %586 = vmatprep.subr.bf16.mxu0 0
    %587 = vmatpush1.bf16.msra.mxu0 0
    %588 = vmatprep.subr.bf16.mxu0 0
    %589 = vmatpush1.bf16.msra.mxu0 %v570
    %590 = vmatprep.subr.bf16.mxu0 0
    %591 = vmatpush1.bf16.msra.mxu0 %v569
    %592 = vmatprep.subr.bf16.mxu0 0
    %593 = vmatpush2.bf16.msra.mxu0 0
    %594 = vmatprep.subr.bf16.mxu0 0
    %595 = vmatpush2.bf16.msra.mxu0 0
    %596 = vmatprep.subr.bf16.mxu0 0
    %597 = vmatpush2.bf16.msra.mxu0 0
    %598 = vmatprep.subr.bf16.mxu0 0
    %599 = vmatpush2.bf16.msra.mxu0 0
    %600 = vmatprep.subr.bf16.mxu0 0
    %601 = vmatpush2.bf16.msra.mxu0 0
    %602 = vmatprep.subr.bf16.mxu0 0
    %603 = vmatpush2.bf16.msra.mxu0 0
    %604 = vmatprep.subr.bf16.mxu0 0
    %605 = vmatpush2.bf16.msra.mxu0 0
    %606 = vmatprep.subr.bf16.mxu0 0
    %607 = vmatpush2.bf16.msra.mxu0 0
    %608 = vmatprep.mubr.bf16.mxu0 0
    %609 = vmatmul.mubr.bf16.gmra.mxu0 %v574
    %v610 = vpop.f32.mrf.mxu0
    %v611 = vadd.f32 %v553, %v610
    %v612 = vpop.f32.mrf.mxu0
    %v613 = vpop.f32.mrf.mxu0
    %v614 = vpop.f32.mrf.mxu0
    %615 = vdwg.mxu0
    %v616 = vld [vmem:[%s4] sm:$0xff]
    %v617 = vld [vmem:[%s4 + $0x8] sm:$0xff]
    %v620 = vunpack.c.l.s4 1966171168
    %v621 = vunpack.c.0.s8 %v620
    %v622 = vlaneseq
    %v623 = vshrl.u32 %v622, 7
    %v624 = vsub.s32 %v621, %v623
    %v625 = vrot.slane %v611, %v624
    %v626 = vcombine.high %v625, %v625
    %v628 = vunpack.c.l.s4 1966171168
    %v629 = vunpack.c.0.s8 %v628
    %v630 = vlaneseq
    %v631 = vshrl.u32 %v630, 7
    %v632 = vsub.s32 %v629, %v631
    %v633 = vrot.slane %v625, %v632
    %v635 = vunpack.c.l.s4 1966171168
    %v636 = vunpack.c.0.s8 %v635
    %v637 = vlaneseq
    %v638 = vshrl.u32 %v637, 7
    %v639 = vsub.s32 %v636, %v638
    %v640 = vrot.slane %v626, %v639
    %v641 = vlaneseq
    %v642 = vshrl.u32 %v641, 7
    %v643 = vsub.s32 0, %v642
    %v644 = vrot.slane %v633, %v643
    %v645 = vlaneseq
    %v646 = vshrl.u32 %v645, 7
    %v647 = vsub.s32 0, %v646
    %v648 = vrot.slane %v640, %v647
    %v651 = vadd.f32 %v616, %v644
    %v652 = vadd.f32 %v617, %v648
    %v653 = vtanh.pop %v651
    %v654 = vtanh.pop %v652
    %v655 = vld [vmem:[#allocation14] sm:$0x1]
    %v657 = vlaneseq
    %v658 = vshrl.u32 %v657, 7
    %v659 = vsub.s32 0, %v658
    %v660 = vrot.slane %v655, %v659
    %v662 = vmul.f32 %v653, %v660
    %v663 = vmul.f32 %v654, %v660
    %v664 = vsel %vm280, %v662, 0.0
    %665 = vadd.xlane.f32.xlu0 %v664
    %v666 = vpop.xlane.xlu0 %665
    %v667 = vsel %vm280, %v663, 0.0
    %668 = vadd.xlane.f32.xlu0 %v667
    %v669 = vpop.xlane.xlu0 %668
    %v670 = vld [vmem:[#allocation9] sm:$0x3]
    %v672 = vlaneseq
    %v673 = vshrl.u32 %v672, 7
    %v674 = vsub.s32 0, %v673
    %v675 = vrot.slane %v670, %v674
    %677 = vbcast.lane.b32.xlu0 %v675, 256
    %v678 = vpop.permute.xlu0 %677
    %v679 = vlaneseq
    %v680 = vshrl.u32 %v679, 7
    %v681 = vsub.s32 1, %v680
    %v682 = vrot.slane %v670, %v681
    %684 = vbcast.lane.b32.xlu0 %v682, 256
    %v685 = vpop.permute.xlu0 %684
    %v688 = vadd.f32 %v666, %v678
    %v689 = vadd.f32 %v669, %v685
    %692 = vset.pattern.permute.xlu0 0
    %693 = vperm.xlu0 %692, %v688
    %v694 = vpop.permute.xlu0 %693
    %695 = vset.pattern.permute.xlu0 0
    %696 = vperm.xlu0 %695, %v689
    %v697 = vpop.permute.xlu0 %696
    %v698 = vlaneseq
    %v699 = vand.u32 %v698, 127
    %v700 = vlaneseq
    %v701 = vshrl.u32 %v700, 7
    %v702 = vsub.s32 %v699, %v701
    %v703 = vrot.slane %v694, %v702
    %v704 = vlaneseq
    %v705 = vshrl.u32 %v704, 7
    %v706 = vsub.s32 %v699, %v705
    %v707 = vrot.slane %v697, %v706
    %vm708 = vcmask 1041409
    %v709 = vsel %vm708, %v707, %v703
    %vm711 = vcmask 58368
    %v712 = vsel %vm711, %v709, -inf
    %713 = vmax.xlane.f32.xlu0 %v712
    %v714 = vpop.xlane.xlu0 %713
    %v716 = vlaneseq
    %v717 = vshrl.u32 %v716, 7
    %v718 = vsub.s32 0, %v717
    %v719 = vrot.slane %v714, %v718
    %v720 = vlaneseq
    %v721 = vshrl.u32 %v720, 7
    %v722 = vsub.s32 1, %v721
    %v723 = vrot.slane %v714, %v722
    %v726 = vsub.f32 %v688, %v719
    %v727 = vsub.f32 %v689, %v723
    %v728 = vmul.f32 %v726, 1.442695
    %v729 = vpow.pop %v728
    %v730 = vmul.f32 %v727, 1.442695
    %v731 = vpow.pop %v730
    %734 = vset.pattern.permute.xlu0 0
    %735 = vperm.xlu0 %734, %v729
    %v736 = vpop.permute.xlu0 %735
    %737 = vset.pattern.permute.xlu0 0
    %738 = vperm.xlu0 %737, %v731
    %v739 = vpop.permute.xlu0 %738
    %v740 = vlaneseq
    %v741 = vshrl.u32 %v740, 7
    %v742 = vsub.s32 %v699, %v741
    %v743 = vrot.slane %v736, %v742
    %v744 = vlaneseq
    %v745 = vshrl.u32 %v744, 7
    %v746 = vsub.s32 %v699, %v745
    %v747 = vrot.slane %v739, %v746
    %v748 = vsel %vm708, %v747, %v743
    %v750 = vsel %vm711, %v748, 0.0
    %751 = vadd.xlane.f32.xlu0 %v750
    %v752 = vpop.xlane.xlu0 %751
    %v753 = vrcp.pop %v752
    %v755 = vlaneseq
    %v756 = vshrl.u32 %v755, 7
    %v757 = vsub.s32 0, %v756
    %v758 = vrot.slane %v753, %v757
    %v759 = vlaneseq
    %v760 = vshrl.u32 %v759, 7
    %v761 = vsub.s32 1, %v760
    %v762 = vrot.slane %v753, %v761
    %v765 = vmul.f32 %v729, %v758
    %v766 = vmul.f32 %v731, %v762
    %v767 = vld [vmem:[%s3] sm:$0xff]
    %v768 = vld [vmem:[%s3 + $0x8] sm:$0xff]
    %770 = vset.pattern.permute.xlu0 0
    %771 = vperm.xlu0 %770, %v765
    %v772 = vpop.permute.xlu0 %771
    %775 = vset.pattern.permute.xlu0 0
    %776 = vperm.xlu0 %775, %v766
    %v777 = vpop.permute.xlu0 %776
    %v779 = vmul.f32 %v772, %v767
    %v780 = vmul.f32 %v777, %v768
    %v781 = vsel %vm280, %v779, 0.0
    %v782 = vrot.slane %v781, 4
    %v783 = vadd.f32 %v781, %v782
    %v784 = vrot.slane %v783, 2
    %v785 = vadd.f32 %v783, %v784
    %v786 = vrot.slane %v785, 1
    %v787 = vadd.f32 %v785, %v786
    %v788 = vsel %vm280, %v780, 0.0
    %v789 = vrot.slane %v788, 4
    %v790 = vadd.f32 %v788, %v789
    %v791 = vrot.slane %v790, 2
    %v792 = vadd.f32 %v790, %v791
    %v793 = vrot.slane %v792, 1
    %v794 = vadd.f32 %v792, %v793
    %v795 = vld [vmem:[#allocation15] sm:$0x1]
    %v797 = vlaneseq
    %v798 = vshrl.u32 %v797, 7
    %v799 = vsub.s32 0, %v798
    %v800 = vrot.slane %v795, %v799
    %v802 = vmul.f32 %v787, %v800
    %v803 = vmul.f32 %v794, %v800
    %v806 = vrot.slane %v803, 7
    %v807 = vsel %vm708, %v806, %v802
    %vm809 = vcmask 517120
    %v810 = vsel %vm809, %v807, 0.0
    %811 = vadd.xlane.f32.xlu0 %v810
    %v812 = vpop.xlane.xlu0 %811
    %v813 = vld [vmem:[#allocation17] sm:$0x1]
    %v815 = vlaneseq
    %v816 = vshrl.u32 %v815, 7
    %v817 = vsub.s32 0, %v816
    %v818 = vrot.slane %v813, %v817
    %819 = vrot.lane.b32.xlu0 %v818, 96
    %v820 = vpop.permute.xlu0 %819
    %v822 = vmul.f32 %v489, %v820
    %824 = vrot.lane.b32.xlu0 %v822, 32
    %v825 = vpop.permute.xlu0 %824
    %vm827 = vcmask 254976
    %v828 = vsel %vm827, %v825, 0.0
    %829 = vadd.xlane.f32.xlu0 %v828
    %v830 = vpop.xlane.xlu0 %829
    %v831 = vadd.f32 %v812, %v830
    %v832 = vld [vmem:[%s18] sm:$0x1]
    %v834 = vlaneseq
    %v835 = vshrl.u32 %v834, 7
    %v836 = vsub.s32 0, %v835
    %v837 = vrot.slane %v832, %v836
    %838 = vrot.lane.b32.xlu0 %v837, 32
    %v839 = vpop.permute.xlu0 %838
    %v841 = vmul.f32 %v483, %v839
    %843 = vrot.lane.b32.xlu0 %v841, 96
    %v844 = vpop.permute.xlu0 %843
    %v846 = vsel %vm827, %v844, 0.0
    %847 = vadd.xlane.f32.xlu0 %v846
    %v848 = vpop.xlane.xlu0 %847
    %v849 = vadd.f32 %v831, %v848
    %v850 = vld [vmem:[%s19] sm:$0x1]
    %v852 = vlaneseq
    %v853 = vshrl.u32 %v852, 7
    %v854 = vsub.s32 0, %v853
    %v855 = vrot.slane %v850, %v854
    %v857 = vmul.f32 %v331, %v855
    %v858 = vsel %vm827, %v857, 0.0
    %859 = vadd.xlane.f32.xlu0 %v858
    %v860 = vpop.xlane.xlu0 %859
    %v861 = vadd.f32 %v849, %v860
    %s862 = sld [smem:[#allocation2]]
    %v863 = vstv %s862
    %v864 = vadd.f32 %v861, %v863
    %v865 = vxor.u32 %v864, 2147483648
    %v866 = vmul.f32 %v865, 1.442695
    %v867 = vpow.pop %v866
    %v868 = vadd.f32 %v867, 1.0
    %v869 = vrcp.pop %v868
    %v870 = vmul.f32 1.0, %v869
    %v871 = vld [vmem:[%s20] sm:$0xf]
    %v872 = vld [vmem:[%s20 + $0x4] sm:$0xf]
    %v873 = vld [vmem:[%s20 + $0x8] sm:$0xf]
    %v874 = vld [vmem:[%s20 + $0xc] sm:$0xf]
    %v875 = vpack.c.bf16 %v787, %v787
    %v876 = vpack.c.bf16 %v794, %v794
    %v877 = vld [vmem:[%s21] sm:$0xf]
    %v878 = vld [vmem:[%s21 + $0x4] sm:$0xf]
    %v879 = vld [vmem:[%s21 + $0x8] sm:$0xf]
    %v880 = vld [vmem:[%s21 + $0xc] sm:$0xf]
    %v881 = vld [vmem:[%s21 + $0x10] sm:$0xf]
    %v882 = vld [vmem:[%s21 + $0x14] sm:$0xf]
    %v883 = vld [vmem:[%s21 + $0x18] sm:$0xf]
    %v884 = vld [vmem:[%s21 + $0x1c] sm:$0xf]
    %v887 = vunpack.c.l.b16 %v875
    %v888 = vunpack.c.l.b16 %v876
    %v889 = vsel %vm708, %v888, %v887
    %v890 = vpack.c.b16 %v889, %v889
    %v899 = vunpack.c.l.b16 %v877
    %v900 = vunpack.c.l.b16 %v878
    %v901 = vunpack.c.l.b16 %v879
    %v902 = vunpack.c.l.b16 %v880
    %v903 = vunpack.c.l.b16 %v881
    %v904 = vunpack.c.l.b16 %v882
    %v905 = vunpack.c.l.b16 %v883
    %v906 = vunpack.c.l.b16 %v884
    %v907 = vpack.c.b16 %v900, %v899
    %v908 = vpack.c.b16 %v902, %v901
    %v909 = vpack.c.b16 %v904, %v903
    %v910 = vpack.c.b16 %v906, %v905
    %v916 = vsel %vm280, %v890, 0
    %918 = vmatprep.subr.bf16.mxu0 0
    %919 = vmatpush1.bf16.msra.mxu0 0
    %920 = vmatprep.subr.bf16.mxu0 0
    %921 = vmatpush1.bf16.msra.mxu0 0
    %922 = vmatprep.subr.bf16.mxu0 0
    %923 = vmatpush1.bf16.msra.mxu0 0
    %924 = vmatprep.subr.bf16.mxu0 0
    %925 = vmatpush1.bf16.msra.mxu0 0
    %926 = vmatprep.subr.bf16.mxu0 0
    %927 = vmatpush1.bf16.msra.mxu0 %v910
    %928 = vmatprep.subr.bf16.mxu0 0
    %929 = vmatpush1.bf16.msra.mxu0 %v909
    %930 = vmatprep.subr.bf16.mxu0 0
    %931 = vmatpush1.bf16.msra.mxu0 %v908
    %932 = vmatprep.subr.bf16.mxu0 0
    %933 = vmatpush1.bf16.msra.mxu0 %v907
    %934 = vmatprep.subr.bf16.mxu0 0
    %935 = vmatpush2.bf16.msra.mxu0 0
    %936 = vmatprep.subr.bf16.mxu0 0
    %937 = vmatpush2.bf16.msra.mxu0 0
    %938 = vmatprep.subr.bf16.mxu0 0
    %939 = vmatpush2.bf16.msra.mxu0 0
    %940 = vmatprep.subr.bf16.mxu0 0
    %941 = vmatpush2.bf16.msra.mxu0 0
    %942 = vmatprep.subr.bf16.mxu0 0
    %943 = vmatpush2.bf16.msra.mxu0 0
    %944 = vmatprep.subr.bf16.mxu0 0
    %945 = vmatpush2.bf16.msra.mxu0 0
    %946 = vmatprep.subr.bf16.mxu0 0
    %947 = vmatpush2.bf16.msra.mxu0 0
    %948 = vmatprep.subr.bf16.mxu0 0
    %949 = vmatpush2.bf16.msra.mxu0 0
    %950 = vmatprep.mubr.bf16.mxu0 0
    %951 = vmatmul.mubr.bf16.gmra.mxu0 %v916
    %v952 = vpop.f32.mrf.mxu0
    %v953 = vadd.f32 0.0, %v952
    %v954 = vpop.f32.mrf.mxu0
    %v955 = vpop.f32.mrf.mxu0
    %v956 = vpop.f32.mrf.mxu0
    %957 = vdwg.mxu0
    %v962 = vunpack.c.l.b16 %v871
    %v963 = vunpack.c.l.b16 %v872
    %v964 = vunpack.c.l.b16 %v873
    %v965 = vunpack.c.l.b16 %v874
    %v966 = vpack.c.b16 %v963, %v962
    %v967 = vpack.c.b16 %v965, %v964
    %970 = vmatprep.subr.bf16.mxu0 0
    %971 = vmatpush1.bf16.msra.mxu0 0
    %972 = vmatprep.subr.bf16.mxu0 0
    %973 = vmatpush1.bf16.msra.mxu0 0
    %974 = vmatprep.subr.bf16.mxu0 0
    %975 = vmatpush1.bf16.msra.mxu0 0
    %976 = vmatprep.subr.bf16.mxu0 0
    %977 = vmatpush1.bf16.msra.mxu0 0
    %978 = vmatprep.subr.bf16.mxu0 0
    %979 = vmatpush1.bf16.msra.mxu0 0
    %980 = vmatprep.subr.bf16.mxu0 0
    %981 = vmatpush1.bf16.msra.mxu0 0
    %982 = vmatprep.subr.bf16.mxu0 0
    %983 = vmatpush1.bf16.msra.mxu0 %v967
    %984 = vmatprep.subr.bf16.mxu0 0
    %985 = vmatpush1.bf16.msra.mxu0 %v966
    %986 = vmatprep.subr.bf16.mxu0 0
    %987 = vmatpush2.bf16.msra.mxu0 0
    %988 = vmatprep.subr.bf16.mxu0 0
    %989 = vmatpush2.bf16.msra.mxu0 0
    %990 = vmatprep.subr.bf16.mxu0 0
    %991 = vmatpush2.bf16.msra.mxu0 0
    %992 = vmatprep.subr.bf16.mxu0 0
    %993 = vmatpush2.bf16.msra.mxu0 0
    %994 = vmatprep.subr.bf16.mxu0 0
    %995 = vmatpush2.bf16.msra.mxu0 0
    %996 = vmatprep.subr.bf16.mxu0 0
    %997 = vmatpush2.bf16.msra.mxu0 0
    %998 = vmatprep.subr.bf16.mxu0 0
    %999 = vmatpush2.bf16.msra.mxu0 0
    %1000 = vmatprep.subr.bf16.mxu0 0
    %1001 = vmatpush2.bf16.msra.mxu0 0
    %1002 = vmatprep.mubr.bf16.mxu0 0
    %1003 = vmatmul.mubr.bf16.gmra.mxu0 %v574
    %v1004 = vpop.f32.mrf.mxu0
    %v1005 = vadd.f32 %v953, %v1004
    %v1006 = vpop.f32.mrf.mxu0
    %v1007 = vpop.f32.mrf.mxu0
    %v1008 = vpop.f32.mrf.mxu0
    %1009 = vdwg.mxu0
    %v1010 = vld [vmem:[%s22] sm:$0x1]
    %v1012 = vlaneseq
    %v1013 = vshrl.u32 %v1012, 7
    %v1014 = vsub.s32 0, %v1013
    %v1015 = vrot.slane %v1010, %v1014
    %v1017 = vadd.f32 %v1005, %v1015
    %v1018 = vmax.f32 %v1017, 0.0
    %1020 = vrot.lane.b32.xlu0 %v489, 32
    %v1021 = vpop.permute.xlu0 %1020
    %v1023 = vsel %vm212, %v1021, 0.0
    %1024 = vst [vmem:[#allocation18] sm:$0x3] %v1023
    %1026 = vrot.lane.b32.xlu0 %v483, 96
    %v1027 = vpop.permute.xlu0 %1026
    %v1029 = vsel %vm212, %v1027, 0.0
    %1030 = vst [vmem:[#allocation18 + $0x2] sm:$0x3] %v1029
    %v1033 = vsel %vm708, %v794, %v787
    %v1035 = vsel %vm280, %v1033, 0.0
    %1036 = vst [vmem:[#allocation18 + $0x4] sm:$0x3] %v1035
    %v1037 = vlaneseq
    %v1038 = vshrl.u32 %v1037, 7
    %v1039 = vsub.s32 %v699, %v1038
    %v1040 = vrot.slane %v772, %v1039
    %v1041 = vlaneseq
    %v1042 = vshrl.u32 %v1041, 7
    %v1043 = vsub.s32 %v699, %v1042
    %v1044 = vrot.slane %v777, %v1043
    %v1045 = vsel %vm708, %v1044, %v1040
    %vm1047 = vcmask 64512
    %v1048 = vsel %vm1047, %v1045, 0.0
    %1049 = vst [vmem:[#allocation18 + $0x6] sm:$0x3] %v1048
    %vm1050 = vcmask 7168
    %v1051 = vsel %vm1050, %v870, 0.0
    %1052 = vst [vmem:[#allocation18 + $0x8] sm:$0x3] %v1051
    %v1053 = vsel %vm212, %v1018, 0.0
    %1054 = vst [vmem:[#allocation18 + $0xa] sm:$0x3] %v1053
    // Predicated region
    $region134: #{tpu_custom_call.1} parent=1 // pred_check
      _
    $region135: #{tpu_custom_call.1} parent=1 // pred_check_branch
      %1056 = sbr.rel (0) target = $region137
    $region136: #{tpu_custom_call.1} parent=1 // pred_region
      %s1058 = ssub.s32 192, 192
      %1059 = vsyncadd [#allocation5], %s1058
      %s1061 = sshll.u32 [#allocation18], 4
      %s1062 = int_to_ptr.vmem [resolvable:$true] %s1061
      %1064 = dma.vmem_to_hbm [thread:$0]  %s1062, 192, %s24, [#allocation5]
    $region137: #{tpu_custom_call.1} parent=1 // pred_fallthru
      _
    // Predicated region
    $region138: #{tpu_custom_call.1} parent=1 // pred_check
      _
    $region139: #{tpu_custom_call.1} parent=1 // pred_check_branch
      %1066 = sbr.rel (0) target = $region141
    $region140: #{tpu_custom_call.1} parent=1 // pred_region
      %1067 = dma.done [#allocation5], 192
    $region141: #{tpu_custom_call.1} parent=1 // pred_fallthru
      _
    %1068 = vsyncpa [#allocation4], 1
    %1069 = vsyncpa [#allocation7], 1
    %1070 = vsyncpa [#allocation10], 1
    %1071 = vsyncpa [#allocation13], 1
    %1072 = vsyncpa [#allocation16], 1
    %1073 = vsyncpa [#allocation5], 1

</llo_original>
